<compile_context>
chip_gen: v7x
topology: tpu7x:2x2x1
jax: 0.10.0
libtpu: 0.0.40
codegen_flags: <defaults>
</compile_context>

<pallas_src>
import jax
import jax.numpy as jnp
from jax.experimental import pallas as pl
from jax.experimental.pallas import tpu as pltpu

N_ESTIMATORS = 4
N_LEAVES = 31
LEAF_DIM = 64
N_NODE_FEATS = 22                      # columns of X
N_CHAN_FEATS = 20                      # chan uses X[chan][:, :20]
BASE_DIM = N_CHAN_FEATS + N_NODE_FEATS           # 42
IN_DIM = BASE_DIM + LEAF_DIM                     # 106
H1, H2, H3 = 36, 20, 12
N_IDX_ROWS = 2 + N_ESTIMATORS                    # chan, dev, 4 leaf ids


# ----------------------------- Pallas kernel ---------------------------------
def fused_mlp_leaf_kernel(pidx_ref, tableT_ref, b1_ref,
                          w2t_ref, b2_ref, w3t_ref, b3_ref, w4t_ref, b4_ref,
                          out_ref):
    f32 = jnp.float32
    bf16 = jnp.bfloat16
    n_rows = tableT_ref.shape[1]          # 188 = 32 (Tc) + 32 (Td) + 124 (leaf)
    n_idx = pidx_ref.shape[0]             # 6
    tb = pidx_ref.shape[1]                # batch tile (lanes)

    # Combined selector [n_rows, tb]: column b has ones at row chan_b,
    # 32+dev_b, and the 4 projected-leaf rows.  Exact in bf16 (0/1 values).
    row_iota = jax.lax.broadcasted_iota(jnp.int32, (n_rows, tb), 0)
    sel = (pidx_ref[0:1, :] == row_iota).astype(bf16)
    for k in range(1, n_idx):
        sel = sel + (pidx_ref[k:k + 1, :] == row_iota).astype(bf16)

    # Layer 1: gather + chan/dev/leaf projection + mean-pool, all in one matmul.
    # tableT already holds X@W1 / emb@W1_leaf (see prepare_fused_params).
    h = jnp.dot(tableT_ref[...], sel, preferred_element_type=f32) + b1_ref[...]
    h = jnp.maximum(h, 0.0)                                       # [36, tb] f32

    h = jnp.dot(w2t_ref[...], h.astype(bf16), preferred_element_type=f32) + b2_ref[...]
    h = jnp.maximum(h, 0.0)                                       # [20, tb]
    h = jnp.dot(w3t_ref[...], h.astype(bf16), preferred_element_type=f32) + b3_ref[...]
    h = jnp.maximum(h, 0.0)                                       # [12, tb]
    h = jnp.dot(w4t_ref[...], h.astype(bf16), preferred_element_type=f32) + b4_ref[...]
    out_ref[...] = jax.nn.sigmoid(h)                              # [1, tb] lane-dense


# ----------------------------- kernel wrapper ---------------------------------
def _round_up(x, m):
    return (x + m - 1) // m * m


def _resident_spec(arr):
    """Full-array (loaded-once) block with a rank-bound constant index map."""
    zeros = (0,) * arr.ndim
    return pl.BlockSpec(tuple(arr.shape), lambda i, _z=zeros: _z)


def run_fused_forward(packed_idx, fp, *, tile_b=None):
    """packed_idx: [6, B] int32 = [chan, dev+n_nodes, 4 x (global_leaf + 2*n_nodes)]."""
    B = packed_idx.shape[1]
    if tile_b is None:
        tile_b = min(2048, _round_up(B, 128))     # big tiles amortize per-step overhead
    tile_b = max(128, _round_up(tile_b, 128))     # lane-dense blocks (last dim % 128 == 0)
    b_pad = _round_up(B, tile_b)
    if b_pad != B:
        # Padded columns are all-zero -> they select table row 0 repeatedly; harmless,
        # their outputs are sliced away below.
        packed_idx = jnp.pad(packed_idx, ((0, 0), (0, b_pad - B)))
    n_blocks = b_pad // tile_b

    in_specs = [
        pl.BlockSpec((N_IDX_ROWS, tile_b), lambda i: (0, i)),     # packed indices
        _resident_spec(fp["tableT"]),
        _resident_spec(fp["b1"]),
        _resident_spec(fp["w2T"]), _resident_spec(fp["b2"]),
        _resident_spec(fp["w3T"]), _resident_spec(fp["b3"]),
        _resident_spec(fp["w4T"]), _resident_spec(fp["b4"]),
    ]
    # Lane-dense output: one [1, tile_b] row per grid step of a (1, b_pad) slab.
    out_spec = pl.BlockSpec((1, tile_b), lambda i: (0, i))

    n_rows = fp["tableT"].shape[1]
    table_bytes = sum(int(fp[k].size) * fp[k].dtype.itemsize
                      for k in ("tableT", "b1", "w2T", "b2", "w3T", "b3", "w4T", "b4"))
    cost = pl.CostEstimate(
        flops=2 * b_pad * (n_rows * H1 + H1 * H2 + H2 * H3 + H3 * 1),
        transcendentals=b_pad,
        bytes_accessed=int(packed_idx.size) * 4 + b_pad * 4 + table_bytes,
    )

    out = pl.pallas_call(
        fused_mlp_leaf_kernel,
        out_shape=jax.ShapeDtypeStruct((1, b_pad), jnp.float32),
        grid=(n_blocks,),
        in_specs=in_specs,
        out_specs=out_spec,
        compiler_params=pltpu.CompilerParams(
            dimension_semantics=("parallel",),          # shards batch steps over v7x's 2 TCs
            vmem_limit_bytes=32 * 1024 * 1024,          # safe on v5e/v6e/v7x at these tiles
        ),
        cost_estimate=cost,
    )(packed_idx, fp["tableT"], fp["b1"], fp["w2T"], fp["b2"],
      fp["w3T"], fp["b3"], fp["w4T"], fp["b4"])
    return out[0, :B].reshape(B, 1)


# --------------------------- model params / glue -------------------------------
def init_params(key):
    """Deterministic init matching the layer shapes of NN_with_leaf_emb."""
    ks = jax.random.split(key, 10)

    def lin(kw, kb, fan_in, fan_out):
        bound = 1.0 / jnp.sqrt(fan_in)
        w = jax.random.uniform(kw, (fan_in, fan_out), jnp.float32, -bound, bound)
        b = jax.random.uniform(kb, (1, fan_out), jnp.float32, -bound, bound)
        return w, b

    w1, b1 = lin(ks[0], ks[1], IN_DIM, H1)
    w2, b2 = lin(ks[2], ks[3], H1, H2)
    w3, b3 = lin(ks[4], ks[5], H2, H3)
    w4, b4 = lin(ks[6], ks[7], H3, 1)
    emb = jax.random.normal(ks[8], (N_ESTIMATORS, N_LEAVES, LEAF_DIM), jnp.float32)
    return {"w1": w1, "b1": b1, "w2": w2, "b2": b2,
            "w3": w3, "b3": b3, "w4": w4, "b4": b4, "emb": emb}


def prepare_fused_params(params, X, dtype=jnp.bfloat16):
    """Fold X, the estimator mean and the leaf projection into layer-1 weights.

    table rows:  [0, n)        -> Tc  = X[:, :20] @ W1_chan   (X[chan][:, :20] folded)
                 [n, 2n)       -> Td  = X         @ W1_dev
                 [2n, 2n+124)  -> emb_proj = (emb @ W1_leaf) / n_estimators
    so selector @ table == feats @ W1 exactly (gather commutes with row-matmul).
    """
    n_nodes = int(X.shape[0])
    w1 = params["w1"]                                   # [106, 36]
    w1_chan = w1[:N_CHAN_FEATS]                         # [20, 36]
    w1_dev = w1[N_CHAN_FEATS:BASE_DIM]                  # [22, 36]
    w1_leaf = w1[BASE_DIM:]                             # [64, 36]

    Tc = X[:, :N_CHAN_FEATS] @ w1_chan                  # [n_nodes, 36]
    Td = X @ w1_dev                                     # [n_nodes, 36]
    emb_proj = jnp.einsum("eld,dh->elh", params["emb"], w1_leaf) / N_ESTIMATORS
    emb_proj = emb_proj.reshape(N_ESTIMATORS * N_LEAVES, H1)        # [124, 36]
    table = jnp.concatenate([Tc, Td, emb_proj], axis=0)             # [188, 36]

    return {
        "tableT": table.T.astype(dtype),                # [36, 188]  bf16 MXU operand
        "b1": params["b1"].T.astype(jnp.float32),       # [36, 1]    f32 bias
        "w2T": params["w2"].T.astype(dtype),            # [20, 36]
        "b2": params["b2"].T.astype(jnp.float32),       # [20, 1]
        "w3T": params["w3"].T.astype(dtype),            # [12, 20]
        "b3": params["b3"].T.astype(jnp.float32),       # [12, 1]
        "w4T": params["w4"].T.astype(dtype),            # [1, 12]
        "b4": params["b4"].T.astype(jnp.float32),       # [1, 1]
        "n_nodes": n_nodes,
    }


def synthetic_pred_leaf(chan, dev):
    # Deterministic stand-in for gbm_best_model.predict_proba(..., pred_leaf=True).
    est = jnp.arange(N_ESTIMATORS, dtype=jnp.int32)[None, :]
    return (chan[:, None] * 7 + dev[:, None] * 13 + est * 3) % N_LEAVES   # [B, n_est]


def forward(edge_data, fp, *, tile_b=None):
    chan = edge_data[:, 0].astype(jnp.int32)
    dev = edge_data[:, 1].astype(jnp.int32)
    labels = edge_data[:, 2]
    n_nodes = fp["n_nodes"]
    pred_leaf = synthetic_pred_leaf(chan, dev)                            # [B, n_est]
    leaf_rows = pred_leaf + N_LEAVES * jnp.arange(N_ESTIMATORS, dtype=jnp.int32)[None, :]
    # One packed, lane-major int32 index array: chan | dev+n | 4 x (leaf + 2n).
    packed = jnp.concatenate(
        [chan[None, :], (dev + n_nodes)[None, :], (leaf_rows + 2 * n_nodes).T],
        axis=0).astype(jnp.int32)                                         # [6, B]
    h = run_fused_forward(packed, fp, tile_b=tile_b)
    return h, labels


def forward_reference(edge_data, X, params):
    """Pure-JAX f32 mirror of the PyTorch module (un-fused) for correctness check."""
    chan = edge_data[:, 0]
    dev = edge_data[:, 1]
    labels = edge_data[:, 2]
    chan_data = X[chan][:, :N_CHAN_FEATS]
    dev_data = X[dev]
    pred_leaf = synthetic_pred_leaf(chan, dev)
    leaf_emb = jnp.stack(
        [params["emb"][i][pred_leaf[:, i]] for i in range(N_ESTIMATORS)], axis=1)
    leaf_mean = jnp.mean(leaf_emb, axis=1)
    feats = jnp.concatenate([chan_data, dev_data, leaf_mean], axis=1)     # [B, 106]
    h = jnp.maximum(feats @ params["w1"] + params["b1"], 0.0)
    h = jnp.maximum(h @ params["w2"] + params["b2"], 0.0)
    h = jnp.maximum(h @ params["w3"] + params["b3"], 0.0)
    h = jax.nn.sigmoid(h @ params["w4"] + params["b4"])
    return h, labels


if __name__ == "__main__":
    key = jax.random.PRNGKey(0)
    k_param, k_x, k_edge = jax.random.split(key, 3)

    B = 200           # batch of edges
    N_NODES = 32      # rows of the feature table X
    X = jax.random.normal(k_x, (N_NODES, N_NODE_FEATS), jnp.float32)

    k_c, k_d, k_l = jax.random.split(k_edge, 3)
    edge_data = jnp.stack([
        jax.random.randint(k_c, (B,), 0, N_NODES, dtype=jnp.int32),   # chan
        jax.random.randint(k_d, (B,), 0, N_NODES, dtype=jnp.int32),   # dev
        jax.random.randint(k_l, (B,), 0, 2, dtype=jnp.int32),         # labels
    ], axis=1)                                                        # [B, 3]

    params = init_params(k_param)
    fp = prepare_fused_params(params, X)

    # tile_b=128 -> b_pad=256, grid=(2,): exercises the tiled, parallel (2-TC) path.
    h, labels = forward(edge_data, fp, tile_b=128)
    h = jax.block_until_ready(h)

    h_ref, labels_ref = forward_reference(edge_data, X, params)
    assert h.shape == (B, 1)
    # bf16 MXU operands -> bf16-level tolerance vs the f32 reference.
    assert jnp.allclose(h, h_ref, atol=2e-2, rtol=0.0), "mismatch vs reference"
    assert jnp.array_equal(labels, labels_ref)

    print("KERNEL_OK")
</pallas_src>

<mosaic_0001>
module attributes {stable_mosaic.version = 11 : i64} {
  func.func @fused_mlp_leaf_kernel(%arg0: i32, %arg1: memref<6x128xi32, #tpu.memory_space<vmem>>, %arg2: memref<36x188xbf16, #tpu.memory_space<vmem>>, %arg3: memref<36x1xf32, #tpu.memory_space<vmem>>, %arg4: memref<20x36xbf16, #tpu.memory_space<vmem>>, %arg5: memref<20x1xf32, #tpu.memory_space<vmem>>, %arg6: memref<12x20xbf16, #tpu.memory_space<vmem>>, %arg7: memref<12x1xf32, #tpu.memory_space<vmem>>, %arg8: memref<1x12xbf16, #tpu.memory_space<vmem>>, %arg9: memref<1x1xf32, #tpu.memory_space<vmem>>, %arg10: memref<1x128xf32, #tpu.memory_space<vmem>>) attributes {dimension_semantics = [#tpu.dimension_semantics<parallel>], iteration_bounds = array<i64: 2>, scalar_prefetch = 0 : i64, scratch_operands = 0 : i64, tpu.core_type = #tpu.core_type<tc>, window_params = [{transform_indices = @transform_0, window_bounds = array<i64: 6, 128>}, {pipeline_mode = #tpu.pipeline_mode<synchronous>, transform_indices = @transform_1, window_bounds = array<i64: 36, 188>}, {pipeline_mode = #tpu.pipeline_mode<synchronous>, transform_indices = @transform_2, window_bounds = array<i64: 36, 1>}, {pipeline_mode = #tpu.pipeline_mode<synchronous>, transform_indices = @transform_3, window_bounds = array<i64: 20, 36>}, {pipeline_mode = #tpu.pipeline_mode<synchronous>, transform_indices = @transform_4, window_bounds = array<i64: 20, 1>}, {pipeline_mode = #tpu.pipeline_mode<synchronous>, transform_indices = @transform_5, window_bounds = array<i64: 12, 20>}, {pipeline_mode = #tpu.pipeline_mode<synchronous>, transform_indices = @transform_6, window_bounds = array<i64: 12, 1>}, {pipeline_mode = #tpu.pipeline_mode<synchronous>, transform_indices = @transform_7, window_bounds = array<i64: 1, 12>}, {pipeline_mode = #tpu.pipeline_mode<synchronous>, transform_indices = @transform_8, window_bounds = array<i64: 1, 1>}, {transform_indices = @transform_9, window_bounds = array<i64: 1, 128>}]} {
    %0 = tpu.iota {dimensions = array<i32: 0>} : vector<188x128xi32>
    %c0 = arith.constant 0 : index
    %c0_0 = arith.constant 0 : index
    %1 = vector.load %arg1[%c0, %c0_0] : memref<6x128xi32, #tpu.memory_space<vmem>>, vector<1x128xi32>
    %2 = vector.broadcast %1 : vector<1x128xi32> to vector<188x128xi32>
    %3 = arith.cmpi eq, %2, %0 : vector<188x128xi32>
    %4 = arith.extui %3 : vector<188x128xi1> to vector<188x128xi32>
    %5 = arith.sitofp %4 : vector<188x128xi32> to vector<188x128xf32>
    %6 = arith.truncf %5 : vector<188x128xf32> to vector<188x128xbf16>
    %c1 = arith.constant 1 : index
    %c0_1 = arith.constant 0 : index
    %7 = vector.load %arg1[%c1, %c0_1] : memref<6x128xi32, #tpu.memory_space<vmem>>, vector<1x128xi32>
    %8 = vector.broadcast %7 : vector<1x128xi32> to vector<188x128xi32>
    %9 = arith.cmpi eq, %8, %0 : vector<188x128xi32>
    %10 = arith.extui %9 : vector<188x128xi1> to vector<188x128xi32>
    %11 = arith.sitofp %10 : vector<188x128xi32> to vector<188x128xf32>
    %12 = arith.truncf %11 : vector<188x128xf32> to vector<188x128xbf16>
    %13 = arith.addf %6, %12 : vector<188x128xbf16>
    %c2 = arith.constant 2 : index
    %c0_2 = arith.constant 0 : index
    %14 = vector.load %arg1[%c2, %c0_2] : memref<6x128xi32, #tpu.memory_space<vmem>>, vector<1x128xi32>
    %15 = vector.broadcast %14 : vector<1x128xi32> to vector<188x128xi32>
    %16 = arith.cmpi eq, %15, %0 : vector<188x128xi32>
    %17 = arith.extui %16 : vector<188x128xi1> to vector<188x128xi32>
    %18 = arith.sitofp %17 : vector<188x128xi32> to vector<188x128xf32>
    %19 = arith.truncf %18 : vector<188x128xf32> to vector<188x128xbf16>
    %20 = arith.addf %13, %19 : vector<188x128xbf16>
    %c3 = arith.constant 3 : index
    %c0_3 = arith.constant 0 : index
    %21 = vector.load %arg1[%c3, %c0_3] : memref<6x128xi32, #tpu.memory_space<vmem>>, vector<1x128xi32>
    %22 = vector.broadcast %21 : vector<1x128xi32> to vector<188x128xi32>
    %23 = arith.cmpi eq, %22, %0 : vector<188x128xi32>
    %24 = arith.extui %23 : vector<188x128xi1> to vector<188x128xi32>
    %25 = arith.sitofp %24 : vector<188x128xi32> to vector<188x128xf32>
    %26 = arith.truncf %25 : vector<188x128xf32> to vector<188x128xbf16>
    %27 = arith.addf %20, %26 : vector<188x128xbf16>
    %c4 = arith.constant 4 : index
    %c0_4 = arith.constant 0 : index
    %28 = vector.load %arg1[%c4, %c0_4] : memref<6x128xi32, #tpu.memory_space<vmem>>, vector<1x128xi32>
    %29 = vector.broadcast %28 : vector<1x128xi32> to vector<188x128xi32>
    %30 = arith.cmpi eq, %29, %0 : vector<188x128xi32>
    %31 = arith.extui %30 : vector<188x128xi1> to vector<188x128xi32>
    %32 = arith.sitofp %31 : vector<188x128xi32> to vector<188x128xf32>
    %33 = arith.truncf %32 : vector<188x128xf32> to vector<188x128xbf16>
    %34 = arith.addf %27, %33 : vector<188x128xbf16>
    %c5 = arith.constant 5 : index
    %c0_5 = arith.constant 0 : index
    %35 = vector.load %arg1[%c5, %c0_5] : memref<6x128xi32, #tpu.memory_space<vmem>>, vector<1x128xi32>
    %36 = vector.broadcast %35 : vector<1x128xi32> to vector<188x128xi32>
    %37 = arith.cmpi eq, %36, %0 : vector<188x128xi32>
    %38 = arith.extui %37 : vector<188x128xi1> to vector<188x128xi32>
    %39 = arith.sitofp %38 : vector<188x128xi32> to vector<188x128xf32>
    %40 = arith.truncf %39 : vector<188x128xf32> to vector<188x128xbf16>
    %41 = arith.addf %34, %40 : vector<188x128xbf16>
    %c0_6 = arith.constant 0 : index
    %c0_7 = arith.constant 0 : index
    %42 = vector.load %arg2[%c0_6, %c0_7] : memref<36x188xbf16, #tpu.memory_space<vmem>>, vector<36x188xbf16>
    %cst = arith.constant dense<0.000000e+00> : vector<36x128xf32>
    %43 = tpu.matmul %42, %41, %cst {dimension_numbers = #tpu.dot_dimension_numbers<[1], [0], [0], [1], [0, 0, 1, 1], [], []>} : vector<36x188xbf16>, vector<188x128xbf16>, vector<36x128xf32> -> vector<36x128xf32>
    %c0_8 = arith.constant 0 : index
    %c0_9 = arith.constant 0 : index
    %44 = vector.load %arg3[%c0_8, %c0_9] : memref<36x1xf32, #tpu.memory_space<vmem>>, vector<36x1xf32>
    %45 = vector.broadcast %44 : vector<36x1xf32> to vector<36x128xf32>
    %46 = arith.addf %43, %45 : vector<36x128xf32>
    %cst_10 = arith.constant 0.000000e+00 : f32
    %47 = vector.broadcast %cst_10 : f32 to vector<36x128xf32>
    %48 = arith.maximumf %46, %47 : vector<36x128xf32>
    %c0_11 = arith.constant 0 : index
    %c0_12 = arith.constant 0 : index
    %49 = vector.load %arg4[%c0_11, %c0_12] : memref<20x36xbf16, #tpu.memory_space<vmem>>, vector<20x36xbf16>
    %50 = arith.truncf %48 : vector<36x128xf32> to vector<36x128xbf16>
    %cst_13 = arith.constant dense<0.000000e+00> : vector<20x128xf32>
    %51 = tpu.matmul %49, %50, %cst_13 {dimension_numbers = #tpu.dot_dimension_numbers<[1], [0], [0], [1], [0, 0, 1, 1], [], []>} : vector<20x36xbf16>, vector<36x128xbf16>, vector<20x128xf32> -> vector<20x128xf32>
    %c0_14 = arith.constant 0 : index
    %c0_15 = arith.constant 0 : index
    %52 = vector.load %arg5[%c0_14, %c0_15] : memref<20x1xf32, #tpu.memory_space<vmem>>, vector<20x1xf32>
    %53 = vector.broadcast %52 : vector<20x1xf32> to vector<20x128xf32>
    %54 = arith.addf %51, %53 : vector<20x128xf32>
    %cst_16 = arith.constant 0.000000e+00 : f32
    %55 = vector.broadcast %cst_16 : f32 to vector<20x128xf32>
    %56 = arith.maximumf %54, %55 : vector<20x128xf32>
    %c0_17 = arith.constant 0 : index
    %c0_18 = arith.constant 0 : index
    %57 = vector.load %arg6[%c0_17, %c0_18] : memref<12x20xbf16, #tpu.memory_space<vmem>>, vector<12x20xbf16>
    %58 = arith.truncf %56 : vector<20x128xf32> to vector<20x128xbf16>
    %cst_19 = arith.constant dense<0.000000e+00> : vector<12x128xf32>
    %59 = tpu.matmul %57, %58, %cst_19 {dimension_numbers = #tpu.dot_dimension_numbers<[1], [0], [0], [1], [0, 0, 1, 1], [], []>} : vector<12x20xbf16>, vector<20x128xbf16>, vector<12x128xf32> -> vector<12x128xf32>
    %c0_20 = arith.constant 0 : index
    %c0_21 = arith.constant 0 : index
    %60 = vector.load %arg7[%c0_20, %c0_21] : memref<12x1xf32, #tpu.memory_space<vmem>>, vector<12x1xf32>
    %61 = vector.broadcast %60 : vector<12x1xf32> to vector<12x128xf32>
    %62 = arith.addf %59, %61 : vector<12x128xf32>
    %cst_22 = arith.constant 0.000000e+00 : f32
    %63 = vector.broadcast %cst_22 : f32 to vector<12x128xf32>
    %64 = arith.maximumf %62, %63 : vector<12x128xf32>
    %c0_23 = arith.constant 0 : index
    %c0_24 = arith.constant 0 : index
    %65 = vector.load %arg8[%c0_23, %c0_24] : memref<1x12xbf16, #tpu.memory_space<vmem>>, vector<1x12xbf16>
    %66 = arith.truncf %64 : vector<12x128xf32> to vector<12x128xbf16>
    %cst_25 = arith.constant dense<0.000000e+00> : vector<1x128xf32>
    %67 = tpu.matmul %65, %66, %cst_25 {dimension_numbers = #tpu.dot_dimension_numbers<[1], [0], [0], [1], [0, 0, 1, 1], [], []>} : vector<1x12xbf16>, vector<12x128xbf16>, vector<1x128xf32> -> vector<1x128xf32>
    %c0_26 = arith.constant 0 : index
    %c0_27 = arith.constant 0 : index
    %68 = vector.load %arg9[%c0_26, %c0_27] : memref<1x1xf32, #tpu.memory_space<vmem>>, vector<1x1xf32>
    %69 = vector.broadcast %68 : vector<1x1xf32> to vector<1x128xf32>
    %70 = arith.addf %67, %69 : vector<1x128xf32>
    %71 = arith.negf %70 : vector<1x128xf32>
    %72 = math.exp %71 : vector<1x128xf32>
    %cst_28 = arith.constant 1.000000e+00 : f32
    %73 = vector.broadcast %cst_28 : f32 to vector<1x128xf32>
    %74 = arith.addf %73, %72 : vector<1x128xf32>
    %75 = arith.divf %73, %74 : vector<1x128xf32>
    %c0_29 = arith.constant 0 : index
    %c0_30 = arith.constant 0 : index
    %76 = vector.load %arg10[%c0_29, %c0_30] : memref<1x128xf32, #tpu.memory_space<vmem>>, vector<1x128xf32>
    tpu.vector_store %arg10[%c0_29, %c0_30], %75 {strides = array<i32>} : memref<1x128xf32, #tpu.memory_space<vmem>>, vector<1x128xf32>,
    return
  }
  func.func @transform_0(%arg0: i32) -> (i32, i32) {
    %c0_i32 = arith.constant 0 : i32
    %c0_i32_0 = arith.constant 0 : i32
    return %c0_i32, %arg0 : i32, i32
  }
  func.func @transform_1(%arg0: i32) -> (i32, i32) {
    %c0_i32 = arith.constant 0 : i32
    %c0_i32_0 = arith.constant 0 : i32
    %c0_i32_1 = arith.constant 0 : i32
    return %c0_i32, %c0_i32_0 : i32, i32
  }
  func.func @transform_2(%arg0: i32) -> (i32, i32) {
    %c0_i32 = arith.constant 0 : i32
    %c0_i32_0 = arith.constant 0 : i32
    %c0_i32_1 = arith.constant 0 : i32
    return %c0_i32, %c0_i32_0 : i32, i32
  }
  func.func @transform_3(%arg0: i32) -> (i32, i32) {
    %c0_i32 = arith.constant 0 : i32
    %c0_i32_0 = arith.constant 0 : i32
    %c0_i32_1 = arith.constant 0 : i32
    return %c0_i32, %c0_i32_0 : i32, i32
  }
  func.func @transform_4(%arg0: i32) -> (i32, i32) {
    %c0_i32 = arith.constant 0 : i32
    %c0_i32_0 = arith.constant 0 : i32
    %c0_i32_1 = arith.constant 0 : i32
    return %c0_i32, %c0_i32_0 : i32, i32
  }
  func.func @transform_5(%arg0: i32) -> (i32, i32) {
    %c0_i32 = arith.constant 0 : i32
    %c0_i32_0 = arith.constant 0 : i32
    %c0_i32_1 = arith.constant 0 : i32
    return %c0_i32, %c0_i32_0 : i32, i32
  }
  func.func @transform_6(%arg0: i32) -> (i32, i32) {
    %c0_i32 = arith.constant 0 : i32
    %c0_i32_0 = arith.constant 0 : i32
    %c0_i32_1 = arith.constant 0 : i32
    return %c0_i32, %c0_i32_0 : i32, i32
  }
  func.func @transform_7(%arg0: i32) -> (i32, i32) {
    %c0_i32 = arith.constant 0 : i32
    %c0_i32_0 = arith.constant 0 : i32
    %c0_i32_1 = arith.constant 0 : i32
    return %c0_i32, %c0_i32_0 : i32, i32
  }
  func.func @transform_8(%arg0: i32) -> (i32, i32) {
    %c0_i32 = arith.constant 0 : i32
    %c0_i32_0 = arith.constant 0 : i32
    %c0_i32_1 = arith.constant 0 : i32
    return %c0_i32, %c0_i32_0 : i32, i32
  }
  func.func @transform_9(%arg0: i32) -> (i32, i32) {
    %c0_i32 = arith.constant 0 : i32
    %c0_i32_0 = arith.constant 0 : i32
    return %c0_i32, %arg0 : i32, i32
  }
}

</mosaic_0001>

<llo_original>
// kernel: tpu_custom_call.1
$region0: #{tpu_custom_call.1}
  #allocation0 [shape = 'u32[]', space=smem, size = 0x4, offset = 0x4, fixed_abs, tag = 'smem constant byte address 0x4 - core index']
  #allocation1 [shape = 'u32[144,128]{1,0:T(1,128)}', space=vmem, size = 0x12000, scoped, tag = 'internal scratch']
  #allocation2 [shape = 'f32[1,1]{1,0:T(1,128)S(1)}', space=vmem, size = 0x200, scoped, tag = 'scoped memory for tpu_custom_call.1']
  %s0 = inlined_call_operand.vmem [shape: s32[6,256], index: 0, kind: input, shape index: {}]
  %s1 = inlined_call_operand.vmem [shape: bf16[36,188], index: 1, kind: input, shape index: {}]
  %s2 = inlined_call_operand.vmem [shape: f32[36,1], index: 2, kind: input, shape index: {}]
  %s3 = inlined_call_operand.vmem [shape: bf16[20,36], index: 3, kind: input, shape index: {}]
  %s4 = inlined_call_operand.vmem [shape: f32[20,1], index: 4, kind: input, shape index: {}]
  %s5 = inlined_call_operand.vmem [shape: bf16[12,20], index: 5, kind: input, shape index: {}]
  %s6 = inlined_call_operand.vmem [shape: f32[12,1], index: 6, kind: input, shape index: {}]
  %s7 = inlined_call_operand.vmem [shape: bf16[1,12], index: 7, kind: input, shape index: {}]
  %s8 = inlined_call_operand.<no memory space> [shape: f32[1,1], index: 8, kind: input, shape index: {}]
  %s9 = inlined_call_operand.hbm [shape: f32[1,256], index: 9, kind: output, shape index: {}]
  %s10 = sld [smem:[#allocation0]]
  $region69: #{tpu_custom_call.1} parent=0
    _
  %s12 = ssub.s32 1, %s10
  %s13 = scalar_select 0, %s12, %s10
  %v14 = vstv %s8
  %15 = vst [vmem:[#allocation2] sm:$0x1] %v14
  $region1: #{tpu_custom_call.1} parent=0
    #allocation3 [shape = 'u8[1024]{0}', space=vmem, size = 0x400, scoped, tag = 'output window, operand 0']
    #allocation4 [shape = 's32[2]{0}', space=sflag, size = 0x8, scoped, tag = 'scoped memory for tpu_custom_call.1']
    %16 = vsyncpa [#allocation4], 0
    %s17 = scalar_lea.sflag [#allocation4], 1
    %18 = vsyncpa %s17, 0
    loop: start=0, step=1, limit=4
    $region2: #{tpu_custom_call.1} parent=1 // loop_pre_header
      _
    $region3: #{tpu_custom_call.1} parent=1 // loop_header
      %s20 = sphi 0, %s24
      %p21 = scmp.ge.s32.totalorder %s20, 4
      %s30 = sphi 0, %s32
      %s33 = sphi 0, %s30
      %s34 = sphi 0, %s33
      %s50 = sphi 0, %s34
      %s54 = sphi 0, %s54
      %s56 = sphi 0, %s54
      %s57 = sphi 0, %s56
      %s71 = sphi 0, %s57
      %s75 = sphi 0, %s75
      %s77 = sphi 0, %s75
      %s78 = sphi 0, %s77
      %s92 = sphi 0, %s78
      %s96 = sphi 0, %s96
      %s98 = sphi 0, %s96
      %s99 = sphi 0, %s98
      %s113 = sphi 0, %s99
      %s117 = sphi 0, %s117
      %s119 = sphi 0, %s117
      %s120 = sphi 0, %s119
      %s134 = sphi 0, %s120
      %s138 = sphi 0, %s138
      %s140 = sphi 0, %s138
      %s141 = sphi 0, %s140
      %s155 = sphi 0, %s141
      %s159 = sphi 0, %s159
      %s161 = sphi 0, %s159
      %s162 = sphi 0, %s161
      %s176 = sphi 0, %s162
      %s180 = sphi 0, %s180
      %s182 = sphi 0, %s180
      %s183 = sphi 0, %s182
      %s197 = sphi 0, %s183
      %s201 = sphi 0, %s201
      %s203 = sphi 0, %s201
      %s204 = sphi 0, %s203
      %s218 = sphi 0, %s204
      %s224 = sphi 0, %s226
      %s227 = sphi 0, %s224
      %s228 = sphi 0, %s227
      %s244 = sphi 0, %s228
    $region4: #{tpu_custom_call.1} parent=1 // loop_header_branch
      %23 = sbr.rel (%p21) target = $region8
    $region5: #{tpu_custom_call.1} parent=1 // loop_body
      %s25 = ssub.s32 %s20, 1
      %s26 = ssub.s32 %s20, 2
      %s27 = sadd.s32 %s20, 1
      %s28 = ssub.s32 %s20, %s27
      %p29 = scmp.eq.s32.totalorder %s28, 0
      %s31 = sadd.s32 %s30, 1
      %s32 = scalar_select %p29, %s30, %s31
      %p35 = pneg %p29
      %p36 = scmp.eq.s32.totalorder %s20, 1
      %p37 = por %p35, %p36
      %p38 = scmp.ne.s32.totalorder %s30, %s33
      %p39 = scmp.eq.s32.totalorder %s20, 0
      %p40 = por %p38, %p39
      %p41 = scmp.ne.s32.totalorder %s30, %s33
      %p42 = scmp.eq.s32.totalorder %s25, 1
      %p43 = por %p41, %p42
      %p44 = scmp.ne.s32.totalorder %s33, %s34
      %p45 = scmp.eq.s32.totalorder %s25, 0
      %p46 = por %p44, %p45
      %p47 = scmp.ne.s32.totalorder %s33, %s34
      %p48 = scmp.eq.s32.totalorder %s26, 1
      %p49 = por %p47, %p48
      %p51 = scmp.ne.s32.totalorder %s34, %s50
      %p52 = scmp.eq.s32.totalorder %s26, 0
      %p53 = por %p51, %p52
      %s55 = sadd.s32 %s54, 1
      %p58 = scmp.eq.s32.totalorder %s20, 1
      %p59 = scmp.ne.s32.totalorder %s54, %s56
      %p60 = scmp.eq.s32.totalorder %s20, 0
      %p61 = por %p59, %p60
      %p62 = scmp.ne.s32.totalorder %s54, %s56
      %p63 = scmp.eq.s32.totalorder %s25, 1
      %p64 = por %p62, %p63
      %p65 = scmp.ne.s32.totalorder %s56, %s57
      %p66 = scmp.eq.s32.totalorder %s25, 0
      %p67 = por %p65, %p66
      %p68 = scmp.ne.s32.totalorder %s56, %s57
      %p69 = scmp.eq.s32.totalorder %s26, 1
      %p70 = por %p68, %p69
      %p72 = scmp.ne.s32.totalorder %s57, %s71
      %p73 = scmp.eq.s32.totalorder %s26, 0
      %p74 = por %p72, %p73
      %s76 = sadd.s32 %s75, 1
      %p79 = scmp.eq.s32.totalorder %s20, 1
      %p80 = scmp.ne.s32.totalorder %s75, %s77
      %p81 = scmp.eq.s32.totalorder %s20, 0
      %p82 = por %p80, %p81
      %p83 = scmp.ne.s32.totalorder %s75, %s77
      %p84 = scmp.eq.s32.totalorder %s25, 1
      %p85 = por %p83, %p84
      %p86 = scmp.ne.s32.totalorder %s77, %s78
      %p87 = scmp.eq.s32.totalorder %s25, 0
      %p88 = por %p86, %p87
      %p89 = scmp.ne.s32.totalorder %s77, %s78
      %p90 = scmp.eq.s32.totalorder %s26, 1
      %p91 = por %p89, %p90
      %p93 = scmp.ne.s32.totalorder %s78, %s92
      %p94 = scmp.eq.s32.totalorder %s26, 0
      %p95 = por %p93, %p94
      %s97 = sadd.s32 %s96, 1
      %p100 = scmp.eq.s32.totalorder %s20, 1
      %p101 = scmp.ne.s32.totalorder %s96, %s98
      %p102 = scmp.eq.s32.totalorder %s20, 0
      %p103 = por %p101, %p102
      %p104 = scmp.ne.s32.totalorder %s96, %s98
      %p105 = scmp.eq.s32.totalorder %s25, 1
      %p106 = por %p104, %p105
      %p107 = scmp.ne.s32.totalorder %s98, %s99
      %p108 = scmp.eq.s32.totalorder %s25, 0
      %p109 = por %p107, %p108
      %p110 = scmp.ne.s32.totalorder %s98, %s99
      %p111 = scmp.eq.s32.totalorder %s26, 1
      %p112 = por %p110, %p111
      %p114 = scmp.ne.s32.totalorder %s99, %s113
      %p115 = scmp.eq.s32.totalorder %s26, 0
      %p116 = por %p114, %p115
      %s118 = sadd.s32 %s117, 1
      %p121 = scmp.eq.s32.totalorder %s20, 1
      %p122 = scmp.ne.s32.totalorder %s117, %s119
      %p123 = scmp.eq.s32.totalorder %s20, 0
      %p124 = por %p122, %p123
      %p125 = scmp.ne.s32.totalorder %s117, %s119
      %p126 = scmp.eq.s32.totalorder %s25, 1
      %p127 = por %p125, %p126
      %p128 = scmp.ne.s32.totalorder %s119, %s120
      %p129 = scmp.eq.s32.totalorder %s25, 0
      %p130 = por %p128, %p129
      %p131 = scmp.ne.s32.totalorder %s119, %s120
      %p132 = scmp.eq.s32.totalorder %s26, 1
      %p133 = por %p131, %p132
      %p135 = scmp.ne.s32.totalorder %s120, %s134
      %p136 = scmp.eq.s32.totalorder %s26, 0
      %p137 = por %p135, %p136
      %s139 = sadd.s32 %s138, 1
      %p142 = scmp.eq.s32.totalorder %s20, 1
      %p143 = scmp.ne.s32.totalorder %s138, %s140
      %p144 = scmp.eq.s32.totalorder %s20, 0
      %p145 = por %p143, %p144
      %p146 = scmp.ne.s32.totalorder %s138, %s140
      %p147 = scmp.eq.s32.totalorder %s25, 1
      %p148 = por %p146, %p147
      %p149 = scmp.ne.s32.totalorder %s140, %s141
      %p150 = scmp.eq.s32.totalorder %s25, 0
      %p151 = por %p149, %p150
      %p152 = scmp.ne.s32.totalorder %s140, %s141
      %p153 = scmp.eq.s32.totalorder %s26, 1
      %p154 = por %p152, %p153
      %p156 = scmp.ne.s32.totalorder %s141, %s155
      %p157 = scmp.eq.s32.totalorder %s26, 0
      %p158 = por %p156, %p157
      %s160 = sadd.s32 %s159, 1
      %p163 = scmp.eq.s32.totalorder %s20, 1
      %p164 = scmp.ne.s32.totalorder %s159, %s161
      %p165 = scmp.eq.s32.totalorder %s20, 0
      %p166 = por %p164, %p165
      %p167 = scmp.ne.s32.totalorder %s159, %s161
      %p168 = scmp.eq.s32.totalorder %s25, 1
      %p169 = por %p167, %p168
      %p170 = scmp.ne.s32.totalorder %s161, %s162
      %p171 = scmp.eq.s32.totalorder %s25, 0
      %p172 = por %p170, %p171
      %p173 = scmp.ne.s32.totalorder %s161, %s162
      %p174 = scmp.eq.s32.totalorder %s26, 1
      %p175 = por %p173, %p174
      %p177 = scmp.ne.s32.totalorder %s162, %s176
      %p178 = scmp.eq.s32.totalorder %s26, 0
      %p179 = por %p177, %p178
      %s181 = sadd.s32 %s180, 1
      %p184 = scmp.eq.s32.totalorder %s20, 1
      %p185 = scmp.ne.s32.totalorder %s180, %s182
      %p186 = scmp.eq.s32.totalorder %s20, 0
      %p187 = por %p185, %p186
      %p188 = scmp.ne.s32.totalorder %s180, %s182
      %p189 = scmp.eq.s32.totalorder %s25, 1
      %p190 = por %p188, %p189
      %p191 = scmp.ne.s32.totalorder %s182, %s183
      %p192 = scmp.eq.s32.totalorder %s25, 0
      %p193 = por %p191, %p192
      %p194 = scmp.ne.s32.totalorder %s182, %s183
      %p195 = scmp.eq.s32.totalorder %s26, 1
      %p196 = por %p194, %p195
      %p198 = scmp.ne.s32.totalorder %s183, %s197
      %p199 = scmp.eq.s32.totalorder %s26, 0
      %p200 = por %p198, %p199
      %s202 = sadd.s32 %s201, 1
      %p205 = scmp.eq.s32.totalorder %s20, 1
      %p206 = scmp.ne.s32.totalorder %s201, %s203
      %p207 = scmp.eq.s32.totalorder %s20, 0
      %p208 = por %p206, %p207
      %p209 = scmp.ne.s32.totalorder %s201, %s203
      %p210 = scmp.eq.s32.totalorder %s25, 1
      %p211 = por %p209, %p210
      %p212 = scmp.ne.s32.totalorder %s203, %s204
      %p213 = scmp.eq.s32.totalorder %s25, 0
      %p214 = por %p212, %p213
      %p215 = scmp.ne.s32.totalorder %s203, %s204
      %p216 = scmp.eq.s32.totalorder %s26, 1
      %p217 = por %p215, %p216
      %p219 = scmp.ne.s32.totalorder %s204, %s218
      %p220 = scmp.eq.s32.totalorder %s26, 0
      %p221 = por %p219, %p220
      %s222 = ssub.s32 %s20, %s27
      %p223 = scmp.eq.s32.totalorder %s222, 0
      %s225 = sadd.s32 %s224, 1
      %s226 = scalar_select %p223, %s224, %s225
      %p229 = pneg %p223
      %p230 = scmp.eq.s32.totalorder %s20, 1
      %p231 = por %p229, %p230
      %p232 = scmp.ne.s32.totalorder %s224, %s227
      %p233 = scmp.eq.s32.totalorder %s20, 0
      %p234 = por %p232, %p233
      %p235 = scmp.ne.s32.totalorder %s224, %s227
      %p236 = scmp.eq.s32.totalorder %s25, 1
      %p237 = por %p235, %p236
      %p238 = scmp.ne.s32.totalorder %s227, %s228
      %p239 = scmp.eq.s32.totalorder %s25, 0
      %p240 = por %p238, %p239
      %p241 = scmp.ne.s32.totalorder %s227, %s228
      %p242 = scmp.eq.s32.totalorder %s26, 1
      %p243 = por %p241, %p242
      %p245 = scmp.ne.s32.totalorder %s228, %s244
      %p246 = scmp.eq.s32.totalorder %s26, 0
      %p247 = por %p245, %p246
      %p248 = scmp.le.s32.totalorder 1, %s20
      %p249 = scmp.lt.s32.totalorder %s20, 3
      %p250 = pnand %p248, %p249
      %p251 = pneg %p250
      // Predicated region
      $region9: #{tpu_custom_call.1} parent=5 // pred_check
        _
      $region10: #{tpu_custom_call.1} parent=5 // pred_check_branch
        %253 = sbr.rel (%p250) target = $region12
      $region11: #{tpu_custom_call.1} parent=5 // pred_region
        %s254 = ssub.s32 %s20, 1
        // Predicated region
        $region13: #{tpu_custom_call.1} parent=11 // pred_check
          %p255 = pneg %p67
        $region14: #{tpu_custom_call.1} parent=11 // pred_check_branch
          %257 = sbr.rel (%p255) target = $region16
        $region15: #{tpu_custom_call.1} parent=11 // pred_region
          _
        $region16: #{tpu_custom_call.1} parent=11 // pred_fallthru
          _
        // Predicated region
        $region17: #{tpu_custom_call.1} parent=11 // pred_check
          %p258 = pneg %p88
        $region18: #{tpu_custom_call.1} parent=11 // pred_check_branch
          %260 = sbr.rel (%p258) target = $region20
        $region19: #{tpu_custom_call.1} parent=11 // pred_region
          _
        $region20: #{tpu_custom_call.1} parent=11 // pred_fallthru
          _
        // Predicated region
        $region21: #{tpu_custom_call.1} parent=11 // pred_check
          %p261 = pneg %p109
        $region22: #{tpu_custom_call.1} parent=11 // pred_check_branch
          %263 = sbr.rel (%p261) target = $region24
        $region23: #{tpu_custom_call.1} parent=11 // pred_region
          _
        $region24: #{tpu_custom_call.1} parent=11 // pred_fallthru
          _
        // Predicated region
        $region25: #{tpu_custom_call.1} parent=11 // pred_check
          %p264 = pneg %p130
        $region26: #{tpu_custom_call.1} parent=11 // pred_check_branch
          %266 = sbr.rel (%p264) target = $region28
        $region27: #{tpu_custom_call.1} parent=11 // pred_region
          _
        $region28: #{tpu_custom_call.1} parent=11 // pred_fallthru
          _
        // Predicated region
        $region29: #{tpu_custom_call.1} parent=11 // pred_check
          %p267 = pneg %p151
        $region30: #{tpu_custom_call.1} parent=11 // pred_check_branch
          %269 = sbr.rel (%p267) target = $region32
        $region31: #{tpu_custom_call.1} parent=11 // pred_region
          _
        $region32: #{tpu_custom_call.1} parent=11 // pred_fallthru
          _
        // Predicated region
        $region33: #{tpu_custom_call.1} parent=11 // pred_check
          %p270 = pneg %p172
        $region34: #{tpu_custom_call.1} parent=11 // pred_check_branch
          %272 = sbr.rel (%p270) target = $region36
        $region35: #{tpu_custom_call.1} parent=11 // pred_region
          _
        $region36: #{tpu_custom_call.1} parent=11 // pred_fallthru
          _
        // Predicated region
        $region37: #{tpu_custom_call.1} parent=11 // pred_check
          %p273 = pneg %p193
        $region38: #{tpu_custom_call.1} parent=11 // pred_check_branch
          %275 = sbr.rel (%p273) target = $region40
        $region39: #{tpu_custom_call.1} parent=11 // pred_region
          _
        $region40: #{tpu_custom_call.1} parent=11 // pred_fallthru
          _
        // Predicated region
        $region41: #{tpu_custom_call.1} parent=11 // pred_check
          %p276 = pneg %p214
        $region42: #{tpu_custom_call.1} parent=11 // pred_check_branch
          %278 = sbr.rel (%p276) target = $region44
        $region43: #{tpu_custom_call.1} parent=11 // pred_region
          _
        $region44: #{tpu_custom_call.1} parent=11 // pred_fallthru
          _
      $region12: #{tpu_custom_call.1} parent=5 // pred_fallthru
        _
      %p279 = scmp.lt.s32.totalorder %s20, 2
      // Predicated region
      $region45: #{tpu_custom_call.1} parent=5 // pred_check
        %p280 = pneg %p279
      $region46: #{tpu_custom_call.1} parent=5 // pred_check_branch
        %282 = sbr.rel (%p280) target = $region48
      $region47: #{tpu_custom_call.1} parent=5 // pred_region
        // Predicated region
        $region49: #{tpu_custom_call.1} parent=47 // pred_check
          %p283 = pneg %p40
        $region50: #{tpu_custom_call.1} parent=47 // pred_check_branch
          %285 = sbr.rel (%p283) target = $region52
        $region51: #{tpu_custom_call.1} parent=47 // pred_region
          %p286 = scmp.lt.s32.totalorder %s20, 1
          %s287 = scalar_select %p286, %s20, 1
          %s288 = smul.addr %s287, 8
          %s289 = scalar_lea.vmem %s0, %s288
        $region52: #{tpu_custom_call.1} parent=47 // pred_fallthru
          _
      $region48: #{tpu_custom_call.1} parent=5 // pred_fallthru
        _
      %p290 = scmp.le.s32.totalorder 1, %s20
      %p291 = scmp.lt.s32.totalorder %s20, 3
      %p292 = pnand %p290, %p291
      %p293 = pneg %p292
      // Predicated region
      $region53: #{tpu_custom_call.1} parent=5 // pred_check
        _
      $region54: #{tpu_custom_call.1} parent=5 // pred_check_branch
        %295 = sbr.rel (%p292) target = $region56
      $region55: #{tpu_custom_call.1} parent=5 // pred_region
        %s296 = ssub.s32 %s20, 1
        %p297 = scmp.lt.s32.totalorder %s25, 1
        %s298 = scalar_select %p297, %s25, 1
        %s299 = smul.addr %s298, 8
        %s300 = scalar_lea.vmem %s0, %s299
        %p301 = pneg %p46
        %p302 = pneg %p43
        %p303 = pneg %p67
        %p304 = pneg %p64
        %p305 = pneg %p88
        %p306 = pneg %p85
        %p307 = pneg %p109
        %p308 = pneg %p106
        %p309 = pneg %p130
        %p310 = pneg %p127
        %p311 = pneg %p151
        %p312 = pneg %p148
        %p313 = pneg %p172
        %p314 = pneg %p169
        %p315 = pneg %p193
        %p316 = pneg %p190
        %p317 = pneg %p214
        %p318 = pneg %p211
        %p319 = pneg %p240
        %p320 = pneg %p237
        %s321 = sand.u32 %s227, 1
        %s322 = scalar_lea.sflag [#allocation4], %s321
        %s323 = sand.u32 %s227, 1
        %s324 = scalar_lea.vmem [#allocation3], %s323
        %p325 = scmp.lt.s32.totalorder %s25, 1
        %s326 = scalar_select %p325, %s25, 1
        %s327 = smul.addr %s326, 8
        %s328 = scalar_lea.vmem %s0, %s327
        %v330 = vlaneseq
        %v331 = vshrl.u32 %v330, 7
        %v332 = vadd.s32 %v331, 8
        %v333 = vadd.s32 %v331, 16
        %v334 = vadd.s32 %v331, 24
        %v335 = vadd.s32 %v331, 32
        %v336 = vadd.s32 %v331, 40
        %v337 = vadd.s32 %v331, 48
        %v338 = vadd.s32 %v331, 56
        %v339 = vadd.s32 %v331, 64
        %v340 = vadd.s32 %v331, 72
        %v341 = vadd.s32 %v331, 80
        %v342 = vadd.s32 %v331, 88
        %v343 = vadd.s32 %v331, 96
        %v344 = vadd.s32 %v331, 104
        %v345 = vadd.s32 %v331, 112
        %v346 = vadd.s32 %v331, 120
        %v347 = vadd.s32 %v331, 128
        %v348 = vadd.s32 %v331, 136
        %v349 = vadd.s32 %v331, 144
        %v350 = vadd.s32 %v331, 152
        %v351 = vadd.s32 %v331, 160
        %v352 = vadd.s32 %v331, 168
        %v353 = vadd.s32 %v331, 176
        %v354 = vadd.s32 %v331, 184
        %v355 = vld [vmem:[%s328] sm:$0x1]
        %v356 = vlaneseq
        %v357 = vshrl.u32 %v356, 7
        %v358 = vsub.s32 0, %v357
        %v359 = vrot.slane %v355, %v358
        %vm360 = vcmp.eq.s32.totalorder %v359, %v331
        %vm361 = vcmp.eq.s32.totalorder %v359, %v332
        %vm362 = vcmp.eq.s32.totalorder %v359, %v333
        %vm363 = vcmp.eq.s32.totalorder %v359, %v334
        %vm364 = vcmp.eq.s32.totalorder %v359, %v335
        %vm365 = vcmp.eq.s32.totalorder %v359, %v336
        %vm366 = vcmp.eq.s32.totalorder %v359, %v337
        %vm367 = vcmp.eq.s32.totalorder %v359, %v338
        %vm368 = vcmp.eq.s32.totalorder %v359, %v339
        %vm369 = vcmp.eq.s32.totalorder %v359, %v340
        %vm370 = vcmp.eq.s32.totalorder %v359, %v341
        %vm371 = vcmp.eq.s32.totalorder %v359, %v342
        %vm372 = vcmp.eq.s32.totalorder %v359, %v343
        %vm373 = vcmp.eq.s32.totalorder %v359, %v344
        %vm374 = vcmp.eq.s32.totalorder %v359, %v345
        %vm375 = vcmp.eq.s32.totalorder %v359, %v346
        %vm376 = vcmp.eq.s32.totalorder %v359, %v347
        %vm377 = vcmp.eq.s32.totalorder %v359, %v348
        %vm378 = vcmp.eq.s32.totalorder %v359, %v349
        %vm379 = vcmp.eq.s32.totalorder %v359, %v350
        %vm380 = vcmp.eq.s32.totalorder %v359, %v351
        %vm381 = vcmp.eq.s32.totalorder %v359, %v352
        %vm382 = vcmp.eq.s32.totalorder %v359, %v353
        %vm383 = vcmp.eq.s32.totalorder %v359, %v354
        %v384 = vsel %vm360, 1, 0
        %v385 = vsel %vm361, 1, 0
        %v386 = vsel %vm362, 1, 0
        %v387 = vsel %vm363, 1, 0
        %v388 = vsel %vm364, 1, 0
        %v389 = vsel %vm365, 1, 0
        %v390 = vsel %vm366, 1, 0
        %v391 = vsel %vm367, 1, 0
        %v392 = vsel %vm368, 1, 0
        %v393 = vsel %vm369, 1, 0
        %v394 = vsel %vm370, 1, 0
        %v395 = vsel %vm371, 1, 0
        %v396 = vsel %vm372, 1, 0
        %v397 = vsel %vm373, 1, 0
        %v398 = vsel %vm374, 1, 0
        %v399 = vsel %vm375, 1, 0
        %v400 = vsel %vm376, 1, 0
        %v401 = vsel %vm377, 1, 0
        %v402 = vsel %vm378, 1, 0
        %v403 = vsel %vm379, 1, 0
        %v404 = vsel %vm380, 1, 0
        %v405 = vsel %vm381, 1, 0
        %v406 = vsel %vm382, 1, 0
        %v407 = vsel %vm383, 1, 0
        %v408 = vcvt.s32.f32 %v384
        %v409 = vcvt.s32.f32 %v385
        %v410 = vcvt.s32.f32 %v386
        %v411 = vcvt.s32.f32 %v387
        %v412 = vcvt.s32.f32 %v388
        %v413 = vcvt.s32.f32 %v389
        %v414 = vcvt.s32.f32 %v390
        %v415 = vcvt.s32.f32 %v391
        %v416 = vcvt.s32.f32 %v392
        %v417 = vcvt.s32.f32 %v393
        %v418 = vcvt.s32.f32 %v394
        %v419 = vcvt.s32.f32 %v395
        %v420 = vcvt.s32.f32 %v396
        %v421 = vcvt.s32.f32 %v397
        %v422 = vcvt.s32.f32 %v398
        %v423 = vcvt.s32.f32 %v399
        %v424 = vcvt.s32.f32 %v400
        %v425 = vcvt.s32.f32 %v401
        %v426 = vcvt.s32.f32 %v402
        %v427 = vcvt.s32.f32 %v403
        %v428 = vcvt.s32.f32 %v404
        %v429 = vcvt.s32.f32 %v405
        %v430 = vcvt.s32.f32 %v406
        %v431 = vcvt.s32.f32 %v407
        %v432 = vpack.c.bf16 %v409, %v408
        %v433 = vpack.c.bf16 %v411, %v410
        %v434 = vpack.c.bf16 %v413, %v412
        %v435 = vpack.c.bf16 %v415, %v414
        %v436 = vpack.c.bf16 %v417, %v416
        %v437 = vpack.c.bf16 %v419, %v418
        %v438 = vpack.c.bf16 %v421, %v420
        %v439 = vpack.c.bf16 %v423, %v422
        %v440 = vpack.c.bf16 %v425, %v424
        %v441 = vpack.c.bf16 %v427, %v426
        %v442 = vpack.c.bf16 %v429, %v428
        %v443 = vpack.c.bf16 %v431, %v430
        %v444 = vld [vmem:[%s328 + $0x1] sm:$0x1]
        %v445 = vlaneseq
        %v446 = vshrl.u32 %v445, 7
        %v447 = vsub.s32 0, %v446
        %v448 = vrot.slane %v444, %v447
        %vm449 = vcmp.eq.s32.totalorder %v448, %v331
        %vm450 = vcmp.eq.s32.totalorder %v448, %v332
        %vm451 = vcmp.eq.s32.totalorder %v448, %v333
        %vm452 = vcmp.eq.s32.totalorder %v448, %v334
        %vm453 = vcmp.eq.s32.totalorder %v448, %v335
        %vm454 = vcmp.eq.s32.totalorder %v448, %v336
        %vm455 = vcmp.eq.s32.totalorder %v448, %v337
        %vm456 = vcmp.eq.s32.totalorder %v448, %v338
        %vm457 = vcmp.eq.s32.totalorder %v448, %v339
        %vm458 = vcmp.eq.s32.totalorder %v448, %v340
        %vm459 = vcmp.eq.s32.totalorder %v448, %v341
        %vm460 = vcmp.eq.s32.totalorder %v448, %v342
        %vm461 = vcmp.eq.s32.totalorder %v448, %v343
        %vm462 = vcmp.eq.s32.totalorder %v448, %v344
        %vm463 = vcmp.eq.s32.totalorder %v448, %v345
        %vm464 = vcmp.eq.s32.totalorder %v448, %v346
        %vm465 = vcmp.eq.s32.totalorder %v448, %v347
        %vm466 = vcmp.eq.s32.totalorder %v448, %v348
        %vm467 = vcmp.eq.s32.totalorder %v448, %v349
        %vm468 = vcmp.eq.s32.totalorder %v448, %v350
        %vm469 = vcmp.eq.s32.totalorder %v448, %v351
        %vm470 = vcmp.eq.s32.totalorder %v448, %v352
        %vm471 = vcmp.eq.s32.totalorder %v448, %v353
        %vm472 = vcmp.eq.s32.totalorder %v448, %v354
        %v473 = vsel %vm449, 1, 0
        %v474 = vsel %vm450, 1, 0
        %v475 = vsel %vm451, 1, 0
        %v476 = vsel %vm452, 1, 0
        %v477 = vsel %vm453, 1, 0
        %v478 = vsel %vm454, 1, 0
        %v479 = vsel %vm455, 1, 0
        %v480 = vsel %vm456, 1, 0
        %v481 = vsel %vm457, 1, 0
        %v482 = vsel %vm458, 1, 0
        %v483 = vsel %vm459, 1, 0
        %v484 = vsel %vm460, 1, 0
        %v485 = vsel %vm461, 1, 0
        %v486 = vsel %vm462, 1, 0
        %v487 = vsel %vm463, 1, 0
        %v488 = vsel %vm464, 1, 0
        %v489 = vsel %vm465, 1, 0
        %v490 = vsel %vm466, 1, 0
        %v491 = vsel %vm467, 1, 0
        %v492 = vsel %vm468, 1, 0
        %v493 = vsel %vm469, 1, 0
        %v494 = vsel %vm470, 1, 0
        %v495 = vsel %vm471, 1, 0
        %v496 = vsel %vm472, 1, 0
        %v497 = vcvt.s32.f32 %v473
        %v498 = vcvt.s32.f32 %v474
        %v499 = vcvt.s32.f32 %v475
        %v500 = vcvt.s32.f32 %v476
        %v501 = vcvt.s32.f32 %v477
        %v502 = vcvt.s32.f32 %v478
        %v503 = vcvt.s32.f32 %v479
        %v504 = vcvt.s32.f32 %v480
        %v505 = vcvt.s32.f32 %v481
        %v506 = vcvt.s32.f32 %v482
        %v507 = vcvt.s32.f32 %v483
        %v508 = vcvt.s32.f32 %v484
        %v509 = vcvt.s32.f32 %v485
        %v510 = vcvt.s32.f32 %v486
        %v511 = vcvt.s32.f32 %v487
        %v512 = vcvt.s32.f32 %v488
        %v513 = vcvt.s32.f32 %v489
        %v514 = vcvt.s32.f32 %v490
        %v515 = vcvt.s32.f32 %v491
        %v516 = vcvt.s32.f32 %v492
        %v517 = vcvt.s32.f32 %v493
        %v518 = vcvt.s32.f32 %v494
        %v519 = vcvt.s32.f32 %v495
        %v520 = vcvt.s32.f32 %v496
        %v521 = vpack.c.bf16 %v498, %v497
        %v522 = vpack.c.bf16 %v500, %v499
        %v523 = vpack.c.bf16 %v502, %v501
        %v524 = vpack.c.bf16 %v504, %v503
        %v525 = vpack.c.bf16 %v506, %v505
        %v526 = vpack.c.bf16 %v508, %v507
        %v527 = vpack.c.bf16 %v510, %v509
        %v528 = vpack.c.bf16 %v512, %v511
        %v529 = vpack.c.bf16 %v514, %v513
        %v530 = vpack.c.bf16 %v516, %v515
        %v531 = vpack.c.bf16 %v518, %v517
        %v532 = vpack.c.bf16 %v520, %v519
        %v533 = vadd.bf16 %v432, %v521
        %v534 = vadd.bf16 %v433, %v522
        %v535 = vadd.bf16 %v434, %v523
        %v536 = vadd.bf16 %v435, %v524
        %v537 = vadd.bf16 %v436, %v525
        %v538 = vadd.bf16 %v437, %v526
        %v539 = vadd.bf16 %v438, %v527
        %v540 = vadd.bf16 %v439, %v528
        %v541 = vadd.bf16 %v440, %v529
        %v542 = vadd.bf16 %v441, %v530
        %v543 = vadd.bf16 %v442, %v531
        %v544 = vadd.bf16 %v443, %v532
        %v545 = vld [vmem:[%s328 + $0x2] sm:$0x1]
        %v546 = vlaneseq
        %v547 = vshrl.u32 %v546, 7
        %v548 = vsub.s32 0, %v547
        %v549 = vrot.slane %v545, %v548
        %vm550 = vcmp.eq.s32.totalorder %v549, %v331
        %vm551 = vcmp.eq.s32.totalorder %v549, %v332
        %vm552 = vcmp.eq.s32.totalorder %v549, %v333
        %vm553 = vcmp.eq.s32.totalorder %v549, %v334
        %vm554 = vcmp.eq.s32.totalorder %v549, %v335
        %vm555 = vcmp.eq.s32.totalorder %v549, %v336
        %vm556 = vcmp.eq.s32.totalorder %v549, %v337
        %vm557 = vcmp.eq.s32.totalorder %v549, %v338
        %vm558 = vcmp.eq.s32.totalorder %v549, %v339
        %vm559 = vcmp.eq.s32.totalorder %v549, %v340
        %vm560 = vcmp.eq.s32.totalorder %v549, %v341
        %vm561 = vcmp.eq.s32.totalorder %v549, %v342
        %vm562 = vcmp.eq.s32.totalorder %v549, %v343
        %vm563 = vcmp.eq.s32.totalorder %v549, %v344
        %vm564 = vcmp.eq.s32.totalorder %v549, %v345
        %vm565 = vcmp.eq.s32.totalorder %v549, %v346
        %vm566 = vcmp.eq.s32.totalorder %v549, %v347
        %vm567 = vcmp.eq.s32.totalorder %v549, %v348
        %vm568 = vcmp.eq.s32.totalorder %v549, %v349
        %vm569 = vcmp.eq.s32.totalorder %v549, %v350
        %vm570 = vcmp.eq.s32.totalorder %v549, %v351
        %vm571 = vcmp.eq.s32.totalorder %v549, %v352
        %vm572 = vcmp.eq.s32.totalorder %v549, %v353
        %vm573 = vcmp.eq.s32.totalorder %v549, %v354
        %v574 = vsel %vm550, 1, 0
        %v575 = vsel %vm551, 1, 0
        %v576 = vsel %vm552, 1, 0
        %v577 = vsel %vm553, 1, 0
        %v578 = vsel %vm554, 1, 0
        %v579 = vsel %vm555, 1, 0
        %v580 = vsel %vm556, 1, 0
        %v581 = vsel %vm557, 1, 0
        %v582 = vsel %vm558, 1, 0
        %v583 = vsel %vm559, 1, 0
        %v584 = vsel %vm560, 1, 0
        %v585 = vsel %vm561, 1, 0
        %v586 = vsel %vm562, 1, 0
        %v587 = vsel %vm563, 1, 0
        %v588 = vsel %vm564, 1, 0
        %v589 = vsel %vm565, 1, 0
        %v590 = vsel %vm566, 1, 0
        %v591 = vsel %vm567, 1, 0
        %v592 = vsel %vm568, 1, 0
        %v593 = vsel %vm569, 1, 0
        %v594 = vsel %vm570, 1, 0
        %v595 = vsel %vm571, 1, 0
        %v596 = vsel %vm572, 1, 0
        %v597 = vsel %vm573, 1, 0
        %v598 = vcvt.s32.f32 %v574
        %v599 = vcvt.s32.f32 %v575
        %v600 = vcvt.s32.f32 %v576
        %v601 = vcvt.s32.f32 %v577
        %v602 = vcvt.s32.f32 %v578
        %v603 = vcvt.s32.f32 %v579
        %v604 = vcvt.s32.f32 %v580
        %v605 = vcvt.s32.f32 %v581
        %v606 = vcvt.s32.f32 %v582
        %v607 = vcvt.s32.f32 %v583
        %v608 = vcvt.s32.f32 %v584
        %v609 = vcvt.s32.f32 %v585
        %v610 = vcvt.s32.f32 %v586
        %v611 = vcvt.s32.f32 %v587
        %v612 = vcvt.s32.f32 %v588
        %v613 = vcvt.s32.f32 %v589
        %v614 = vcvt.s32.f32 %v590
        %v615 = vcvt.s32.f32 %v591
        %v616 = vcvt.s32.f32 %v592
        %v617 = vcvt.s32.f32 %v593
        %v618 = vcvt.s32.f32 %v594
        %v619 = vcvt.s32.f32 %v595
        %v620 = vcvt.s32.f32 %v596
        %v621 = vcvt.s32.f32 %v597
        %v622 = vpack.c.bf16 %v599, %v598
        %v623 = vpack.c.bf16 %v601, %v600
        %v624 = vpack.c.bf16 %v603, %v602
        %v625 = vpack.c.bf16 %v605, %v604
        %v626 = vpack.c.bf16 %v607, %v606
        %v627 = vpack.c.bf16 %v609, %v608
        %v628 = vpack.c.bf16 %v611, %v610
        %v629 = vpack.c.bf16 %v613, %v612
        %v630 = vpack.c.bf16 %v615, %v614
        %v631 = vpack.c.bf16 %v617, %v616
        %v632 = vpack.c.bf16 %v619, %v618
        %v633 = vpack.c.bf16 %v621, %v620
        %v634 = vadd.bf16 %v533, %v622
        %v635 = vadd.bf16 %v534, %v623
        %v636 = vadd.bf16 %v535, %v624
        %v637 = vadd.bf16 %v536, %v625
        %v638 = vadd.bf16 %v537, %v626
        %v639 = vadd.bf16 %v538, %v627
        %v640 = vadd.bf16 %v539, %v628
        %v641 = vadd.bf16 %v540, %v629
        %v642 = vadd.bf16 %v541, %v630
        %v643 = vadd.bf16 %v542, %v631
        %v644 = vadd.bf16 %v543, %v632
        %v645 = vadd.bf16 %v544, %v633
        %v646 = vld [vmem:[%s328 + $0x3] sm:$0x1]
        %v647 = vlaneseq
        %v648 = vshrl.u32 %v647, 7
        %v649 = vsub.s32 0, %v648
        %v650 = vrot.slane %v646, %v649
        %vm651 = vcmp.eq.s32.totalorder %v650, %v331
        %vm652 = vcmp.eq.s32.totalorder %v650, %v332
        %vm653 = vcmp.eq.s32.totalorder %v650, %v333
        %vm654 = vcmp.eq.s32.totalorder %v650, %v334
        %vm655 = vcmp.eq.s32.totalorder %v650, %v335
        %vm656 = vcmp.eq.s32.totalorder %v650, %v336
        %vm657 = vcmp.eq.s32.totalorder %v650, %v337
        %vm658 = vcmp.eq.s32.totalorder %v650, %v338
        %vm659 = vcmp.eq.s32.totalorder %v650, %v339
        %vm660 = vcmp.eq.s32.totalorder %v650, %v340
        %vm661 = vcmp.eq.s32.totalorder %v650, %v341
        %vm662 = vcmp.eq.s32.totalorder %v650, %v342
        %vm663 = vcmp.eq.s32.totalorder %v650, %v343
        %vm664 = vcmp.eq.s32.totalorder %v650, %v344
        %vm665 = vcmp.eq.s32.totalorder %v650, %v345
        %vm666 = vcmp.eq.s32.totalorder %v650, %v346
        %vm667 = vcmp.eq.s32.totalorder %v650, %v347
        %vm668 = vcmp.eq.s32.totalorder %v650, %v348
        %vm669 = vcmp.eq.s32.totalorder %v650, %v349
        %vm670 = vcmp.eq.s32.totalorder %v650, %v350
        %vm671 = vcmp.eq.s32.totalorder %v650, %v351
        %vm672 = vcmp.eq.s32.totalorder %v650, %v352
        %vm673 = vcmp.eq.s32.totalorder %v650, %v353
        %vm674 = vcmp.eq.s32.totalorder %v650, %v354
        %v675 = vsel %vm651, 1, 0
        %v676 = vsel %vm652, 1, 0
        %v677 = vsel %vm653, 1, 0
        %v678 = vsel %vm654, 1, 0
        %v679 = vsel %vm655, 1, 0
        %v680 = vsel %vm656, 1, 0
        %v681 = vsel %vm657, 1, 0
        %v682 = vsel %vm658, 1, 0
        %v683 = vsel %vm659, 1, 0
        %v684 = vsel %vm660, 1, 0
        %v685 = vsel %vm661, 1, 0
        %v686 = vsel %vm662, 1, 0
        %v687 = vsel %vm663, 1, 0
        %v688 = vsel %vm664, 1, 0
        %v689 = vsel %vm665, 1, 0
        %v690 = vsel %vm666, 1, 0
        %v691 = vsel %vm667, 1, 0
        %v692 = vsel %vm668, 1, 0
        %v693 = vsel %vm669, 1, 0
        %v694 = vsel %vm670, 1, 0
        %v695 = vsel %vm671, 1, 0
        %v696 = vsel %vm672, 1, 0
        %v697 = vsel %vm673, 1, 0
        %v698 = vsel %vm674, 1, 0
        %v699 = vcvt.s32.f32 %v675
        %v700 = vcvt.s32.f32 %v676
        %v701 = vcvt.s32.f32 %v677
        %v702 = vcvt.s32.f32 %v678
        %v703 = vcvt.s32.f32 %v679
        %v704 = vcvt.s32.f32 %v680
        %v705 = vcvt.s32.f32 %v681
        %v706 = vcvt.s32.f32 %v682
        %v707 = vcvt.s32.f32 %v683
        %v708 = vcvt.s32.f32 %v684
        %v709 = vcvt.s32.f32 %v685
        %v710 = vcvt.s32.f32 %v686
        %v711 = vcvt.s32.f32 %v687
        %v712 = vcvt.s32.f32 %v688
        %v713 = vcvt.s32.f32 %v689
        %v714 = vcvt.s32.f32 %v690
        %v715 = vcvt.s32.f32 %v691
        %v716 = vcvt.s32.f32 %v692
        %v717 = vcvt.s32.f32 %v693
        %v718 = vcvt.s32.f32 %v694
        %v719 = vcvt.s32.f32 %v695
        %v720 = vcvt.s32.f32 %v696
        %v721 = vcvt.s32.f32 %v697
        %v722 = vcvt.s32.f32 %v698
        %v723 = vpack.c.bf16 %v700, %v699
        %v724 = vpack.c.bf16 %v702, %v701
        %v725 = vpack.c.bf16 %v704, %v703
        %v726 = vpack.c.bf16 %v706, %v705
        %v727 = vpack.c.bf16 %v708, %v707
        %v728 = vpack.c.bf16 %v710, %v709
        %v729 = vpack.c.bf16 %v712, %v711
        %v730 = vpack.c.bf16 %v714, %v713
        %v731 = vpack.c.bf16 %v716, %v715
        %v732 = vpack.c.bf16 %v718, %v717
        %v733 = vpack.c.bf16 %v720, %v719
        %v734 = vpack.c.bf16 %v722, %v721
        %v735 = vadd.bf16 %v634, %v723
        %v736 = vadd.bf16 %v635, %v724
        %v737 = vadd.bf16 %v636, %v725
        %v738 = vadd.bf16 %v637, %v726
        %v739 = vadd.bf16 %v638, %v727
        %v740 = vadd.bf16 %v639, %v728
        %v741 = vadd.bf16 %v640, %v729
        %v742 = vadd.bf16 %v641, %v730
        %v743 = vadd.bf16 %v642, %v731
        %v744 = vadd.bf16 %v643, %v732
        %v745 = vadd.bf16 %v644, %v733
        %v746 = vadd.bf16 %v645, %v734
        %v747 = vld [vmem:[%s328 + $0x4] sm:$0x1]
        %v748 = vlaneseq
        %v749 = vshrl.u32 %v748, 7
        %v750 = vsub.s32 0, %v749
        %v751 = vrot.slane %v747, %v750
        %vm752 = vcmp.eq.s32.totalorder %v751, %v331
        %vm753 = vcmp.eq.s32.totalorder %v751, %v332
        %vm754 = vcmp.eq.s32.totalorder %v751, %v333
        %vm755 = vcmp.eq.s32.totalorder %v751, %v334
        %vm756 = vcmp.eq.s32.totalorder %v751, %v335
        %vm757 = vcmp.eq.s32.totalorder %v751, %v336
        %vm758 = vcmp.eq.s32.totalorder %v751, %v337
        %vm759 = vcmp.eq.s32.totalorder %v751, %v338
        %vm760 = vcmp.eq.s32.totalorder %v751, %v339
        %vm761 = vcmp.eq.s32.totalorder %v751, %v340
        %vm762 = vcmp.eq.s32.totalorder %v751, %v341
        %vm763 = vcmp.eq.s32.totalorder %v751, %v342
        %vm764 = vcmp.eq.s32.totalorder %v751, %v343
        %vm765 = vcmp.eq.s32.totalorder %v751, %v344
        %vm766 = vcmp.eq.s32.totalorder %v751, %v345
        %vm767 = vcmp.eq.s32.totalorder %v751, %v346
        %vm768 = vcmp.eq.s32.totalorder %v751, %v347
        %vm769 = vcmp.eq.s32.totalorder %v751, %v348
        %vm770 = vcmp.eq.s32.totalorder %v751, %v349
        %vm771 = vcmp.eq.s32.totalorder %v751, %v350
        %vm772 = vcmp.eq.s32.totalorder %v751, %v351
        %vm773 = vcmp.eq.s32.totalorder %v751, %v352
        %vm774 = vcmp.eq.s32.totalorder %v751, %v353
        %vm775 = vcmp.eq.s32.totalorder %v751, %v354
        %v776 = vsel %vm752, 1, 0
        %v777 = vsel %vm753, 1, 0
        %v778 = vsel %vm754, 1, 0
        %v779 = vsel %vm755, 1, 0
        %v780 = vsel %vm756, 1, 0
        %v781 = vsel %vm757, 1, 0
        %v782 = vsel %vm758, 1, 0
        %v783 = vsel %vm759, 1, 0
        %v784 = vsel %vm760, 1, 0
        %v785 = vsel %vm761, 1, 0
        %v786 = vsel %vm762, 1, 0
        %v787 = vsel %vm763, 1, 0
        %v788 = vsel %vm764, 1, 0
        %v789 = vsel %vm765, 1, 0
        %v790 = vsel %vm766, 1, 0
        %v791 = vsel %vm767, 1, 0
        %v792 = vsel %vm768, 1, 0
        %v793 = vsel %vm769, 1, 0
        %v794 = vsel %vm770, 1, 0
        %v795 = vsel %vm771, 1, 0
        %v796 = vsel %vm772, 1, 0
        %v797 = vsel %vm773, 1, 0
        %v798 = vsel %vm774, 1, 0
        %v799 = vsel %vm775, 1, 0
        %v800 = vcvt.s32.f32 %v776
        %v801 = vcvt.s32.f32 %v777
        %v802 = vcvt.s32.f32 %v778
        %v803 = vcvt.s32.f32 %v779
        %v804 = vcvt.s32.f32 %v780
        %v805 = vcvt.s32.f32 %v781
        %v806 = vcvt.s32.f32 %v782
        %v807 = vcvt.s32.f32 %v783
        %v808 = vcvt.s32.f32 %v784
        %v809 = vcvt.s32.f32 %v785
        %v810 = vcvt.s32.f32 %v786
        %v811 = vcvt.s32.f32 %v787
        %v812 = vcvt.s32.f32 %v788
        %v813 = vcvt.s32.f32 %v789
        %v814 = vcvt.s32.f32 %v790
        %v815 = vcvt.s32.f32 %v791
        %v816 = vcvt.s32.f32 %v792
        %v817 = vcvt.s32.f32 %v793
        %v818 = vcvt.s32.f32 %v794
        %v819 = vcvt.s32.f32 %v795
        %v820 = vcvt.s32.f32 %v796
        %v821 = vcvt.s32.f32 %v797
        %v822 = vcvt.s32.f32 %v798
        %v823 = vcvt.s32.f32 %v799
        %v824 = vpack.c.bf16 %v801, %v800
        %v825 = vpack.c.bf16 %v803, %v802
        %v826 = vpack.c.bf16 %v805, %v804
        %v827 = vpack.c.bf16 %v807, %v806
        %v828 = vpack.c.bf16 %v809, %v808
        %v829 = vpack.c.bf16 %v811, %v810
        %v830 = vpack.c.bf16 %v813, %v812
        %v831 = vpack.c.bf16 %v815, %v814
        %v832 = vpack.c.bf16 %v817, %v816
        %v833 = vpack.c.bf16 %v819, %v818
        %v834 = vpack.c.bf16 %v821, %v820
        %v835 = vpack.c.bf16 %v823, %v822
        %v836 = vadd.bf16 %v735, %v824
        %v837 = vadd.bf16 %v736, %v825
        %v838 = vadd.bf16 %v737, %v826
        %v839 = vadd.bf16 %v738, %v827
        %v840 = vadd.bf16 %v739, %v828
        %v841 = vadd.bf16 %v740, %v829
        %v842 = vadd.bf16 %v741, %v830
        %v843 = vadd.bf16 %v742, %v831
        %v844 = vadd.bf16 %v743, %v832
        %v845 = vadd.bf16 %v744, %v833
        %v846 = vadd.bf16 %v745, %v834
        %v847 = vadd.bf16 %v746, %v835
        %v848 = vld [vmem:[%s328 + $0x5] sm:$0x1]
        %v849 = vlaneseq
        %v850 = vshrl.u32 %v849, 7
        %v851 = vsub.s32 0, %v850
        %v852 = vrot.slane %v848, %v851
        %vm853 = vcmp.eq.s32.totalorder %v852, %v331
        %vm854 = vcmp.eq.s32.totalorder %v852, %v332
        %vm855 = vcmp.eq.s32.totalorder %v852, %v333
        %vm856 = vcmp.eq.s32.totalorder %v852, %v334
        %vm857 = vcmp.eq.s32.totalorder %v852, %v335
        %vm858 = vcmp.eq.s32.totalorder %v852, %v336
        %vm859 = vcmp.eq.s32.totalorder %v852, %v337
        %vm860 = vcmp.eq.s32.totalorder %v852, %v338
        %vm861 = vcmp.eq.s32.totalorder %v852, %v339
        %vm862 = vcmp.eq.s32.totalorder %v852, %v340
        %vm863 = vcmp.eq.s32.totalorder %v852, %v341
        %vm864 = vcmp.eq.s32.totalorder %v852, %v342
        %vm865 = vcmp.eq.s32.totalorder %v852, %v343
        %vm866 = vcmp.eq.s32.totalorder %v852, %v344
        %vm867 = vcmp.eq.s32.totalorder %v852, %v345
        %vm868 = vcmp.eq.s32.totalorder %v852, %v346
        %vm869 = vcmp.eq.s32.totalorder %v852, %v347
        %vm870 = vcmp.eq.s32.totalorder %v852, %v348
        %vm871 = vcmp.eq.s32.totalorder %v852, %v349
        %vm872 = vcmp.eq.s32.totalorder %v852, %v350
        %vm873 = vcmp.eq.s32.totalorder %v852, %v351
        %vm874 = vcmp.eq.s32.totalorder %v852, %v352
        %vm875 = vcmp.eq.s32.totalorder %v852, %v353
        %vm876 = vcmp.eq.s32.totalorder %v852, %v354
        %v877 = vsel %vm853, 1, 0
        %v878 = vsel %vm854, 1, 0
        %v879 = vsel %vm855, 1, 0
        %v880 = vsel %vm856, 1, 0
        %v881 = vsel %vm857, 1, 0
        %v882 = vsel %vm858, 1, 0
        %v883 = vsel %vm859, 1, 0
        %v884 = vsel %vm860, 1, 0
        %v885 = vsel %vm861, 1, 0
        %v886 = vsel %vm862, 1, 0
        %v887 = vsel %vm863, 1, 0
        %v888 = vsel %vm864, 1, 0
        %v889 = vsel %vm865, 1, 0
        %v890 = vsel %vm866, 1, 0
        %v891 = vsel %vm867, 1, 0
        %v892 = vsel %vm868, 1, 0
        %v893 = vsel %vm869, 1, 0
        %v894 = vsel %vm870, 1, 0
        %v895 = vsel %vm871, 1, 0
        %v896 = vsel %vm872, 1, 0
        %v897 = vsel %vm873, 1, 0
        %v898 = vsel %vm874, 1, 0
        %v899 = vsel %vm875, 1, 0
        %v900 = vsel %vm876, 1, 0
        %v901 = vcvt.s32.f32 %v877
        %v902 = vcvt.s32.f32 %v878
        %v903 = vcvt.s32.f32 %v879
        %v904 = vcvt.s32.f32 %v880
        %v905 = vcvt.s32.f32 %v881
        %v906 = vcvt.s32.f32 %v882
        %v907 = vcvt.s32.f32 %v883
        %v908 = vcvt.s32.f32 %v884
        %v909 = vcvt.s32.f32 %v885
        %v910 = vcvt.s32.f32 %v886
        %v911 = vcvt.s32.f32 %v887
        %v912 = vcvt.s32.f32 %v888
        %v913 = vcvt.s32.f32 %v889
        %v914 = vcvt.s32.f32 %v890
        %v915 = vcvt.s32.f32 %v891
        %v916 = vcvt.s32.f32 %v892
        %v917 = vcvt.s32.f32 %v893
        %v918 = vcvt.s32.f32 %v894
        %v919 = vcvt.s32.f32 %v895
        %v920 = vcvt.s32.f32 %v896
        %v921 = vcvt.s32.f32 %v897
        %v922 = vcvt.s32.f32 %v898
        %v923 = vcvt.s32.f32 %v899
        %v924 = vcvt.s32.f32 %v900
        %v925 = vpack.c.bf16 %v902, %v901
        %v926 = vpack.c.bf16 %v904, %v903
        %v927 = vpack.c.bf16 %v906, %v905
        %v928 = vpack.c.bf16 %v908, %v907
        %v929 = vpack.c.bf16 %v910, %v909
        %v930 = vpack.c.bf16 %v912, %v911
        %v931 = vpack.c.bf16 %v914, %v913
        %v932 = vpack.c.bf16 %v916, %v915
        %v933 = vpack.c.bf16 %v918, %v917
        %v934 = vpack.c.bf16 %v920, %v919
        %v935 = vpack.c.bf16 %v922, %v921
        %v936 = vpack.c.bf16 %v924, %v923
        %v937 = vadd.bf16 %v836, %v925
        %v938 = vadd.bf16 %v837, %v926
        %v939 = vadd.bf16 %v838, %v927
        %v940 = vadd.bf16 %v839, %v928
        %v941 = vadd.bf16 %v840, %v929
        %v942 = vadd.bf16 %v841, %v930
        %v943 = vadd.bf16 %v842, %v931
        %v944 = vadd.bf16 %v843, %v932
        %v945 = vadd.bf16 %v844, %v933
        %v946 = vadd.bf16 %v845, %v934
        %v947 = vadd.bf16 %v846, %v935
        %v948 = vadd.bf16 %v847, %v936
        %v949 = vld [vmem:[%s1] sm:$0xff]
        %v950 = vld [vmem:[%s1 + $0x8] sm:$0xff]
        %v951 = vld [vmem:[%s1 + $0x10] sm:$0xff]
        %v952 = vld [vmem:[%s1 + $0x18] sm:$0xff]
        %v953 = vld [vmem:[%s1 + $0x20] sm:$0x33]
        %v954 = vld [vmem:[%s2] sm:$0xff]
        %v955 = vld [vmem:[%s2 + $0x8] sm:$0xff]
        %v956 = vld [vmem:[%s2 + $0x10] sm:$0xff]
        %v957 = vld [vmem:[%s2 + $0x18] sm:$0xff]
        %v958 = vld [vmem:[%s2 + $0x20] sm:$0xf]
        %960 = vset.pattern.permute.xlu0 0
        %961 = vperm.xlu0 %960, %v954
        %v962 = vpop.permute.xlu0 %961
        %965 = vset.pattern.permute.xlu0 0
        %966 = vperm.xlu0 %965, %v955
        %v967 = vpop.permute.xlu0 %966
        %970 = vset.pattern.permute.xlu0 0
        %971 = vperm.xlu0 %970, %v956
        %v972 = vpop.permute.xlu0 %971
        %975 = vset.pattern.permute.xlu0 0
        %976 = vperm.xlu0 %975, %v957
        %v977 = vpop.permute.xlu0 %976
        %980 = vset.pattern.permute.xlu0 0
        %981 = vperm.xlu0 %980, %v958
        %v982 = vpop.permute.xlu0 %981
        %v989 = vunpack.c.l.b16 %v949
        %v990 = vunpack.c.h.b16 %v949
        %v991 = vunpack.c.l.b16 %v950
        %v992 = vunpack.c.h.b16 %v950
        %v993 = vunpack.c.l.b16 %v951
        %v994 = vunpack.c.h.b16 %v951
        %v995 = vunpack.c.l.b16 %v952
        %v996 = vunpack.c.h.b16 %v952
        %v997 = vunpack.c.l.b16 %v953
        %v998 = vunpack.c.h.b16 %v953
        %v999 = vpack.c.b16 %v991, %v989
        %v1000 = vpack.c.b16 %v992, %v990
        %v1001 = vpack.c.b16 %v995, %v993
        %v1002 = vpack.c.b16 %v996, %v994
        %v1003 = vpack.c.b16 %v997, %v997
        %v1004 = vpack.c.b16 %v998, %v998
        %vm1008 = vcmask 490496
        %v1010 = vsel %vm1008, %v1000, 0
        %v1013 = vsel %vm1008, %v1002, 0
        %v1016 = vsel %vm1008, %v1004, 0
        %vm1018 = vcmask 1045504
        %v1020 = vsel %vm1018, %v948, 0
        %1022 = vmatprep.subr.bf16.mxu0 0
        %1023 = vmatpush1.bf16.msra.mxu0 %v937
        %1024 = vmatprep.subr.bf16.mxu0 0
        %1025 = vmatpush1.bf16.msra.mxu0 %v938
        %1026 = vmatprep.subr.bf16.mxu0 0
        %1027 = vmatpush1.bf16.msra.mxu0 %v939
        %1028 = vmatprep.subr.bf16.mxu0 0
        %1029 = vmatpush1.bf16.msra.mxu0 %v940
        %1030 = vmatprep.subr.bf16.mxu0 0
        %1031 = vmatpush1.bf16.msra.mxu0 %v941
        %1032 = vmatprep.subr.bf16.mxu0 0
        %1033 = vmatpush1.bf16.msra.mxu0 %v942
        %1034 = vmatprep.subr.bf16.mxu0 0
        %1035 = vmatpush1.bf16.msra.mxu0 %v943
        %1036 = vmatprep.subr.bf16.mxu0 0
        %1037 = vmatpush1.bf16.msra.mxu0 %v944
        %1038 = vmatprep.subr.bf16.mxu0 0
        %1039 = vmatpush1.bf16.msra.mxu0 %v945
        %1040 = vmatprep.subr.bf16.mxu0 0
        %1041 = vmatpush1.bf16.msra.mxu0 %v946
        %1042 = vmatprep.subr.bf16.mxu0 0
        %1043 = vmatpush1.bf16.msra.mxu0 %v947
        %1044 = vmatprep.subr.bf16.mxu0 0
        %1045 = vmatpush1.bf16.msra.mxu0 %v1020
        %1046 = vmatprep.subr.bf16.mxu0 0
        %1047 = vmatpush1.bf16.msra.mxu0 0
        %1048 = vmatprep.subr.bf16.mxu0 0
        %1049 = vmatpush1.bf16.msra.mxu0 0
        %1050 = vmatprep.subr.bf16.mxu0 0
        %1051 = vmatpush1.bf16.msra.mxu0 0
        %1052 = vmatprep.subr.bf16.mxu0 0
        %1053 = vmatpush1.bf16.msra.mxu0 0
        %1054 = vmatprep.mubr.bf16.mxu0 %v1010
        %1055 = vmatmul.mubr.bf16.gmra.mrb[0].mxu0 %v999
        %v1056 = vpop.f32.mrb[0].mxu0
        %v1057 = vadd.f32 %v962, %v1056
        %v1058 = vpop.f32.mrb[0].mxu0
        %v1059 = vpop.f32.mrb[0].mxu0
        %v1060 = vadd.f32 %v967, %v1059
        %v1061 = vpop.f32.mrb[0].mxu0
        %1062 = vmatprep.mubr.bf16.mxu0 %v1013
        %1063 = vmatmul.mubr.bf16.gmra.mrb[0].mxu0 %v1001
        %v1064 = vpop.f32.mrb[0].mxu0
        %v1065 = vadd.f32 %v972, %v1064
        %v1066 = vpop.f32.mrb[0].mxu0
        %v1067 = vpop.f32.mrb[0].mxu0
        %v1068 = vadd.f32 %v977, %v1067
        %v1069 = vpop.f32.mrb[0].mxu0
        %1070 = vmatprep.mubr.bf16.mxu0 %v1016
        %1071 = vmatmul.mubr.bf16.gmra.mrb[0].mxu0 %v1003
        %v1072 = vpop.f32.mrb[0].mxu0
        %v1073 = vadd.f32 %v982, %v1072
        %v1074 = vpop.f32.mrb[0].mxu0
        %v1075 = vpop.f32.mrb[0].mxu0
        %v1076 = vpop.f32.mrb[0].mxu0
        %1077 = vdwg.mxu0
        %v1078 = vmax.f32 %v1057, 0.0
        %v1079 = vmax.f32 %v1060, 0.0
        %v1080 = vmax.f32 %v1065, 0.0
        %v1081 = vmax.f32 %v1068, 0.0
        %v1082 = vmax.f32 %v1073, 0.0
        %v1083 = vld [vmem:[%s3] sm:$0xf]
        %v1084 = vld [vmem:[%s3 + $0x4] sm:$0xf]
        %v1085 = vld [vmem:[%s3 + $0x8] sm:$0x3]
        %v1086 = vpack.c.bf16 %v1079, %v1078
        %v1087 = vpack.c.bf16 %v1081, %v1080
        %v1088 = vpack.c.bf16 %v1082, %v1082
        %v1089 = vld [vmem:[%s4] sm:$0xff]
        %v1090 = vld [vmem:[%s4 + $0x8] sm:$0xff]
        %v1091 = vld [vmem:[%s4 + $0x10] sm:$0xf]
        %1093 = vset.pattern.permute.xlu0 0
        %1094 = vperm.xlu0 %1093, %v1089
        %v1095 = vpop.permute.xlu0 %1094
        %1098 = vset.pattern.permute.xlu0 0
        %1099 = vperm.xlu0 %1098, %v1090
        %v1100 = vpop.permute.xlu0 %1099
        %1103 = vset.pattern.permute.xlu0 0
        %1104 = vperm.xlu0 %1103, %v1091
        %v1105 = vpop.permute.xlu0 %1104
        %v1110 = vunpack.c.l.b16 %v1083
        %v1111 = vunpack.c.l.b16 %v1084
        %v1112 = vunpack.c.l.b16 %v1085
        %v1113 = vpack.c.b16 %v1111, %v1110
        %v1114 = vpack.c.b16 %v1112, %v1112
        %vm1115 = vcmask 293888
        %v1117 = vsel %vm1115, %v1113, 0
        %v1120 = vsel %vm1115, %v1114, 0
        %vm1122 = vcmask 1041408
        %v1124 = vsel %vm1122, %v1088, 0
        %1126 = vmatprep.subr.bf16.mxu0 0
        %1127 = vmatpush1.bf16.msra.mxu0 %v1086
        %1128 = vmatprep.subr.bf16.mxu0 0
        %1129 = vmatpush1.bf16.msra.mxu0 %v1087
        %1130 = vmatprep.subr.bf16.mxu0 0
        %1131 = vmatpush1.bf16.msra.mxu0 %v1124
        %1132 = vmatprep.subr.bf16.mxu0 0
        %1133 = vmatpush1.bf16.msra.mxu0 0
        %1134 = vmatprep.subr.bf16.mxu0 0
        %1135 = vmatpush1.bf16.msra.mxu0 0
        %1136 = vmatprep.subr.bf16.mxu0 0
        %1137 = vmatpush1.bf16.msra.mxu0 0
        %1138 = vmatprep.subr.bf16.mxu0 0
        %1139 = vmatpush1.bf16.msra.mxu0 0
        %1140 = vmatprep.subr.bf16.mxu0 0
        %1141 = vmatpush1.bf16.msra.mxu0 0
        %1142 = vmatprep.subr.bf16.mxu0 0
        %1143 = vmatpush1.bf16.msra.mxu0 0
        %1144 = vmatprep.subr.bf16.mxu0 0
        %1145 = vmatpush1.bf16.msra.mxu0 0
        %1146 = vmatprep.subr.bf16.mxu0 0
        %1147 = vmatpush1.bf16.msra.mxu0 0
        %1148 = vmatprep.subr.bf16.mxu0 0
        %1149 = vmatpush1.bf16.msra.mxu0 0
        %1150 = vmatprep.subr.bf16.mxu0 0
        %1151 = vmatpush1.bf16.msra.mxu0 0
        %1152 = vmatprep.subr.bf16.mxu0 0
        %1153 = vmatpush1.bf16.msra.mxu0 0
        %1154 = vmatprep.subr.bf16.mxu0 0
        %1155 = vmatpush1.bf16.msra.mxu0 0
        %1156 = vmatprep.subr.bf16.mxu0 0
        %1157 = vmatpush1.bf16.msra.mxu0 0
        %1158 = vmatprep.mubr.bf16.mxu0 0
        %1159 = vmatmul.mubr.bf16.gmra.mrb[0].mxu0 %v1117
        %v1160 = vpop.f32.mrb[0].mxu0
        %v1161 = vadd.f32 %v1095, %v1160
        %v1162 = vpop.f32.mrb[0].mxu0
        %v1163 = vpop.f32.mrb[0].mxu0
        %v1164 = vadd.f32 %v1100, %v1163
        %v1165 = vpop.f32.mrb[0].mxu0
        %1166 = vmatprep.mubr.bf16.mxu0 0
        %1167 = vmatmul.mubr.bf16.gmra.mrb[0].mxu0 %v1120
        %v1168 = vpop.f32.mrb[0].mxu0
        %v1169 = vadd.f32 %v1105, %v1168
        %v1170 = vpop.f32.mrb[0].mxu0
        %v1171 = vpop.f32.mrb[0].mxu0
        %v1172 = vpop.f32.mrb[0].mxu0
        %1173 = vdwg.mxu0
        %v1174 = vmax.f32 %v1161, 0.0
        %v1175 = vmax.f32 %v1164, 0.0
        %v1176 = vmax.f32 %v1169, 0.0
        %v1177 = vld [vmem:[%s5] sm:$0xf]
        %v1178 = vld [vmem:[%s5 + $0x4] sm:$0x3]
        %v1179 = vpack.c.bf16 %v1175, %v1174
        %v1180 = vpack.c.bf16 %v1176, %v1176
        %v1181 = vld [vmem:[%s6] sm:$0xff]
        %v1182 = vld [vmem:[%s6 + $0x8] sm:$0xf]
        %1184 = vset.pattern.permute.xlu0 0
        %1185 = vperm.xlu0 %1184, %v1181
        %v1186 = vpop.permute.xlu0 %1185
        %1189 = vset.pattern.permute.xlu0 0
        %1190 = vperm.xlu0 %1189, %v1182
        %v1191 = vpop.permute.xlu0 %1190
        %v1195 = vunpack.c.l.b16 %v1177
        %v1196 = vunpack.c.l.b16 %v1178
        %v1197 = vpack.c.b16 %v1196, %v1195
        %vm1198 = vcmask 162816
        %v1200 = vsel %vm1198, %v1197, 0
        %v1203 = vsel %vm1122, %v1180, 0
        %1205 = vmatprep.subr.bf16.mxu0 0
        %1206 = vmatpush1.bf16.msra.mxu0 %v1179
        %1207 = vmatprep.subr.bf16.mxu0 0
        %1208 = vmatpush1.bf16.msra.mxu0 %v1203
        %1209 = vmatprep.subr.bf16.mxu0 0
        %1210 = vmatpush1.bf16.msra.mxu0 0
        %1211 = vmatprep.subr.bf16.mxu0 0
        %1212 = vmatpush1.bf16.msra.mxu0 0
        %1213 = vmatprep.subr.bf16.mxu0 0
        %1214 = vmatpush1.bf16.msra.mxu0 0
        %1215 = vmatprep.subr.bf16.mxu0 0
        %1216 = vmatpush1.bf16.msra.mxu0 0
        %1217 = vmatprep.subr.bf16.mxu0 0
        %1218 = vmatpush1.bf16.msra.mxu0 0
        %1219 = vmatprep.subr.bf16.mxu0 0
        %1220 = vmatpush1.bf16.msra.mxu0 0
        %1221 = vmatprep.subr.bf16.mxu0 0
        %1222 = vmatpush1.bf16.msra.mxu0 0
        %1223 = vmatprep.subr.bf16.mxu0 0
        %1224 = vmatpush1.bf16.msra.mxu0 0
        %1225 = vmatprep.subr.bf16.mxu0 0
        %1226 = vmatpush1.bf16.msra.mxu0 0
        %1227 = vmatprep.subr.bf16.mxu0 0
        %1228 = vmatpush1.bf16.msra.mxu0 0
        %1229 = vmatprep.subr.bf16.mxu0 0
        %1230 = vmatpush1.bf16.msra.mxu0 0
        %1231 = vmatprep.subr.bf16.mxu0 0
        %1232 = vmatpush1.bf16.msra.mxu0 0
        %1233 = vmatprep.subr.bf16.mxu0 0
        %1234 = vmatpush1.bf16.msra.mxu0 0
        %1235 = vmatprep.subr.bf16.mxu0 0
        %1236 = vmatpush1.bf16.msra.mxu0 0
        %1237 = vmatprep.mubr.bf16.mxu0 0
        %1238 = vmatmul.mubr.bf16.gmra.mrb[0].mxu0 %v1200
        %v1239 = vpop.f32.mrb[0].mxu0
        %v1240 = vadd.f32 %v1186, %v1239
        %v1241 = vpop.f32.mrb[0].mxu0
        %v1242 = vpop.f32.mrb[0].mxu0
        %v1243 = vadd.f32 %v1191, %v1242
        %v1244 = vpop.f32.mrb[0].mxu0
        %1245 = vdwg.mxu0
        %v1246 = vmax.f32 %v1240, 0.0
        %v1247 = vmax.f32 %v1243, 0.0
        %v1248 = vld [vmem:[%s7] sm:$0x1]
        %v1249 = vpack.c.bf16 %v1247, %v1246
        %v1250 = vld [vmem:[#allocation2] sm:$0x1]
        %1252 = vset.pattern.permute.xlu0 0
        %1253 = vperm.xlu0 %1252, %v1250
        %v1254 = vpop.permute.xlu0 %1253
        %v1256 = vlaneseq
        %v1257 = vshrl.u32 %v1256, 7
        %v1258 = vsub.s32 0, %v1257
        %v1259 = vrot.slane %v1254, %v1258
        %vm1260 = vcmask 97280
        %v1262 = vsel %vm1260, %v1248, 0
        %v1265 = vsel %vm1018, %v1249, 0
        %1267 = vmatprep.subr.bf16.mxu0 0
        %1268 = vmatpush1.bf16.msra.mxu0 %v1265
        %1269 = vmatprep.subr.bf16.mxu0 0
        %1270 = vmatpush1.bf16.msra.mxu0 0
        %1271 = vmatprep.subr.bf16.mxu0 0
        %1272 = vmatpush1.bf16.msra.mxu0 0
        %1273 = vmatprep.subr.bf16.mxu0 0
        %1274 = vmatpush1.bf16.msra.mxu0 0
        %1275 = vmatprep.subr.bf16.mxu0 0
        %1276 = vmatpush1.bf16.msra.mxu0 0
        %1277 = vmatprep.subr.bf16.mxu0 0
        %1278 = vmatpush1.bf16.msra.mxu0 0
        %1279 = vmatprep.subr.bf16.mxu0 0
        %1280 = vmatpush1.bf16.msra.mxu0 0
        %1281 = vmatprep.subr.bf16.mxu0 0
        %1282 = vmatpush1.bf16.msra.mxu0 0
        %1283 = vmatprep.subr.bf16.mxu0 0
        %1284 = vmatpush1.bf16.msra.mxu0 0
        %1285 = vmatprep.subr.bf16.mxu0 0
        %1286 = vmatpush1.bf16.msra.mxu0 0
        %1287 = vmatprep.subr.bf16.mxu0 0
        %1288 = vmatpush1.bf16.msra.mxu0 0
        %1289 = vmatprep.subr.bf16.mxu0 0
        %1290 = vmatpush1.bf16.msra.mxu0 0
        %1291 = vmatprep.subr.bf16.mxu0 0
        %1292 = vmatpush1.bf16.msra.mxu0 0
        %1293 = vmatprep.subr.bf16.mxu0 0
        %1294 = vmatpush1.bf16.msra.mxu0 0
        %1295 = vmatprep.subr.bf16.mxu0 0
        %1296 = vmatpush1.bf16.msra.mxu0 0
        %1297 = vmatprep.subr.bf16.mxu0 0
        %1298 = vmatpush1.bf16.msra.mxu0 0
        %1299 = vmatprep.mubr.bf16.mxu0 0
        %1300 = vmatmul.mubr.bf16.gmra.mrb[0].mxu0 %v1262
        %v1301 = vpop.f32.mrb[0].mxu0
        %v1302 = vadd.f32 %v1259, %v1301
        %v1303 = vpop.f32.mrb[0].mxu0
        %v1304 = vpop.f32.mrb[0].mxu0
        %v1305 = vpop.f32.mrb[0].mxu0
        %1306 = vdwg.mxu0
        %v1307 = vxor.u32 %v1302, 2147483648
        %v1308 = vmul.f32 %v1307, 1.442695
        %v1309 = vpow.pop %v1308
        %v1310 = vadd.f32 %v1309, 1.0
        %v1311 = vrcp.pop %v1310
        %v1312 = vmul.f32 1.0, %v1311
        %1313 = vst [vmem:[%s324] sm:$0x1] %v1312
        %s1314 = sand.u32 %s227, 1
        %s1315 = scalar_lea.sflag [#allocation4], %s1314
        %s1316 = sand.u32 %s227, 1
        %s1317 = scalar_lea.vmem [#allocation3], %s1316
        // Predicated region
        $region57: #{tpu_custom_call.1} parent=55 // pred_check
          %p1318 = pneg %p237
        $region58: #{tpu_custom_call.1} parent=55 // pred_check_branch
          %1320 = sbr.rel (%p1318) target = $region60
        $region59: #{tpu_custom_call.1} parent=55 // pred_region
          %s1322 = ssub.s32 16, 16
          %1323 = vsyncadd %s1315, %s1322
          %s1324 = smul.addr %s25, 16
          %s1325 = scalar_lea.hbm %s9, %s1324
          %s1327 = sshll.u32 %s1317, 4
          %s1328 = int_to_ptr.vmem [resolvable:$true] %s1327
          %1330 = dma.vmem_to_hbm [thread:$0]  %s1328, 16, %s1325, %s1315
        $region60: #{tpu_custom_call.1} parent=55 // pred_fallthru
          _
      $region56: #{tpu_custom_call.1} parent=5 // pred_fallthru
        _
      %p1331 = scmp.le.s32.totalorder 2, %s20
      // Predicated region
      $region61: #{tpu_custom_call.1} parent=5 // pred_check
        %p1332 = pneg %p1331
      $region62: #{tpu_custom_call.1} parent=5 // pred_check_branch
        %1334 = sbr.rel (%p1332) target = $region64
      $region63: #{tpu_custom_call.1} parent=5 // pred_region
        %s1335 = ssub.s32 %s20, 2
        // Predicated region
        $region65: #{tpu_custom_call.1} parent=63 // pred_check
          %p1336 = pneg %p243
        $region66: #{tpu_custom_call.1} parent=63 // pred_check_branch
          %1338 = sbr.rel (%p1336) target = $region68
        $region67: #{tpu_custom_call.1} parent=63 // pred_region
          %s1339 = sand.u32 %s228, 1
          %s1340 = scalar_lea.sflag [#allocation4], %s1339
          %s1341 = sand.u32 %s228, 1
          %s1342 = scalar_lea.vmem [#allocation3], %s1341
          %1343 = dma.done %s1340, 16
        $region68: #{tpu_custom_call.1} parent=63 // pred_fallthru
          _
      $region64: #{tpu_custom_call.1} parent=5 // pred_fallthru
        _
    $region6: #{tpu_custom_call.1} parent=1 // loop_footer
      %s24 = sadd.s32 1, %s20
    $region7: #{tpu_custom_call.1} parent=1 // loop_footer_branch
      %19 = sbr.rel target = $region3
    $region8: #{tpu_custom_call.1} parent=1 // loop_exit
      _
    %1344 = vsyncpa [#allocation4], 1
    %s1345 = scalar_lea.sflag [#allocation4], 1
    %1346 = vsyncpa %s1345, 1

</llo_original>
